<compile_context>
chip_gen: v5e
topology: v5e:2x2
jax: 0.10.0
libtpu: 0.0.40
codegen_flags: <defaults>
</compile_context>

<pallas_src>
import functools

import jax
import jax.numpy as jnp
from jax import lax
from jax.experimental import pallas as pl
from jax.experimental.pallas import tpu as pltpu

EPS = 1e-5
_VMEM_LIMIT = 32 * 1024 * 1024  # explicit VMEM budget (safe on v5e/v6e/v7x)


# ---------------------------------------------------------------------------
# Pallas kernels
# ---------------------------------------------------------------------------
def _mm_stats_kernel(a_ref, w_ref, y_ref, st_ref):
    """y = a @ w (bf16 MXU, f32 acc); also emit per-tile (sum, sum_sq) over rows."""
    y = jnp.dot(a_ref[...].astype(jnp.bfloat16), w_ref[...],
                preferred_element_type=jnp.float32)
    y_ref[...] = y
    ssum = jnp.sum(y, axis=0, keepdims=True)
    ssq = jnp.sum(y * y, axis=0, keepdims=True)
    st_ref[...] = jnp.concatenate([ssum, ssq], axis=0)[None]


def _bn_relu_mm_stats_kernel(a_ref, sc_ref, sh_ref, w_ref, y_ref, st_ref):
    """y = relu(a*scale + shift) @ w  -- previous stage's BN-apply fused in."""
    act = jnp.maximum(a_ref[...] * sc_ref[...] + sh_ref[...], 0.0)
    y = jnp.dot(act.astype(jnp.bfloat16), w_ref[...],
                preferred_element_type=jnp.float32)
    y_ref[...] = y
    ssum = jnp.sum(y, axis=0, keepdims=True)
    ssq = jnp.sum(y * y, axis=0, keepdims=True)
    st_ref[...] = jnp.concatenate([ssum, ssq], axis=0)[None]


def _bn_add_relu_kernel(y_ref, s_ref, sc_ref, sh_ref, o_ref):
    """out = relu(BN3(y) + identity shortcut)."""
    o_ref[...] = jnp.maximum(y_ref[...] * sc_ref[...] + sh_ref[...] + s_ref[...], 0.0)


def _bn_proj_add_relu_kernel(y_ref, xs_ref, sc_ref, sh_ref, ws_ref, o_ref):
    """out = relu(BN3(y) + xs @ ws) -- 1x1 projection shortcut fused in."""
    short = jnp.dot(xs_ref[...].astype(jnp.bfloat16), ws_ref[...],
                    preferred_element_type=jnp.float32)
    o_ref[...] = jnp.maximum(y_ref[...] * sc_ref[...] + sh_ref[...] + short, 0.0)


def _conv3x3_row_kernel(x_ref, sc_ref, sh_ref, w_ref, y_ref, st_ref,
                        *, stride, H, W, Wo):
    """One output row of the 3x3 conv; grid = (image, out_row, k_h).

    x_ref : (1, 1, stride, Wq, Cin) one zero-padded *raw* (pre-BN1) input row, its W
            axis parity-split by stride so every tap read is a static contiguous slice.
    y_ref : (1, 1, Wo, Cout) resident f32 accumulator across the (arbitrary) k_h axis.
    st_ref: (1, 1, 2, Cout) per-output-row (sum, sum_sq) partials for BN2.
    """
    kh = pl.program_id(2)
    h_idx = pl.program_id(1) * stride + kh          # row index in the padded image

    @pl.when(kh == 0)
    def _init():
        y_ref[...] = jnp.zeros_like(y_ref)

    x = x_ref[0, 0]                                 # (stride, Wq, Cin) raw f32
    act = jnp.maximum(x * sc_ref[...] + sh_ref[...], 0.0)     # fused BN1 + ReLU
    # Zero the spatial padding: raw padding is 0, but relu(0*scale + shift) is not.
    p_io = lax.broadcasted_iota(jnp.int32, act.shape, 0)
    q_io = lax.broadcasted_iota(jnp.int32, act.shape, 1)
    w_orig = q_io * stride + p_io
    valid = (w_orig >= 1) & (w_orig <= W) & (h_idx >= 1) & (h_idx <= H)
    act = jnp.where(valid, act, 0.0).astype(jnp.bfloat16)

    cout = y_ref.shape[-1]
    contrib = jnp.zeros((Wo, cout), jnp.float32)
    for kw in range(3):                             # 3 shifted accumulating MXU dots
        patch = act[kw % stride, kw // stride: kw // stride + Wo, :]   # (Wo, Cin)
        contrib = contrib + jnp.dot(patch, w_ref[kw],
                                    preferred_element_type=jnp.float32)
    y_ref[...] = y_ref[...] + contrib[None, None]

    @pl.when(kh == pl.num_programs(2) - 1)
    def _stats():
        row = y_ref[0, 0]                           # (Wo, Cout) finished output row
        ssum = jnp.sum(row, axis=0, keepdims=True)
        ssq = jnp.sum(row * row, axis=0, keepdims=True)
        st_ref[...] = jnp.concatenate([ssum, ssq], axis=0)[None, None]


# ---------------------------------------------------------------------------
# Wrapper helpers
# ---------------------------------------------------------------------------
def _row_tile(m, target=512):
    """Largest divisor of m that is <= target (no padded/garbage rows ever enter a
    tile, so BN partial sums stay exact)."""
    t = min(m, target)
    while m % t:
        t -= 1
    return t


def _rows_call(kernel, n_rows, tile, row_inputs, bcast_inputs, out_dim, stats_dim=None):
    """Row-tiled, pipelined pallas_call over a (n_rows // tile,) 'parallel' grid."""
    nt = n_rows // tile
    in_specs = (
        [pl.BlockSpec((tile, a.shape[1]), lambda i: (i, 0)) for a in row_inputs]
        + [pl.BlockSpec(a.shape, lambda i, nd=a.ndim: (0,) * nd) for a in bcast_inputs])
    out_shape = [jax.ShapeDtypeStruct((n_rows, out_dim), jnp.float32)]
    out_specs = [pl.BlockSpec((tile, out_dim), lambda i: (i, 0))]
    if stats_dim is not None:
        out_shape.append(jax.ShapeDtypeStruct((nt, 2, stats_dim), jnp.float32))
        out_specs.append(pl.BlockSpec((1, 2, stats_dim), lambda i: (i, 0, 0)))
    return pl.pallas_call(
        kernel,
        grid=(nt,),
        in_specs=in_specs,
        out_specs=out_specs if stats_dim is not None else out_specs[0],
        out_shape=out_shape if stats_dim is not None else out_shape[0],
        compiler_params=pltpu.CompilerParams(
            dimension_semantics=("parallel",),
            vmem_limit_bytes=_VMEM_LIMIT),
    )(*row_inputs, *bcast_inputs)


def _bn_affine(stats, count, gamma, beta):
    """Fold cross-tile (sum, sum_sq) partials into per-channel scale/shift (f32)."""
    tot = jnp.sum(stats, axis=tuple(range(stats.ndim - 2)))      # (2, C)
    mean = tot[0] / count
    var = jnp.maximum(tot[1] / count - mean * mean, 0.0)
    scale = gamma * lax.rsqrt(var + EPS)
    shift = beta - mean * scale
    return scale.reshape(1, -1), shift.reshape(1, -1)


# ---------------------------------------------------------------------------
# BottleneckBlock forward (Pallas)
# ---------------------------------------------------------------------------
def bottleneck_forward(x_nchw, params, half_res):
    N, Cin, H, W = x_nchw.shape
    s = 2 if half_res else 1
    bdim = params["w1"].shape[0]
    outdim = params["w3"].shape[0]
    if Cin == outdim and half_res:
        # Also ill-formed in the original PyTorch module (identity shortcut cannot be
        # added to a spatially-downsampled main path).
        raise ValueError("identity shortcut requires half_res=False")

    x_nhwc = jnp.transpose(x_nchw, (0, 2, 3, 1)).astype(jnp.float32)
    M1 = N * H * W

    # ---- stage 1: C1 (1x1, no bias) + BN1 partial stats --------------------------
    a1 = x_nhwc.reshape(M1, Cin)
    w1 = jnp.transpose(params["w1"].reshape(bdim, Cin)).astype(jnp.bfloat16)
    t1 = _row_tile(M1)
    y1_raw, st1 = _rows_call(_mm_stats_kernel, M1, t1, [a1], [w1], bdim,
                             stats_dim=bdim)
    sc1, sh1 = _bn_affine(st1, M1, params["g1"], params["b1"])

    # ---- stage 2: BN1+ReLU fused into C2 (3x3, stride s, pad 1) -------------------
    # C2's bias is mathematically cancelled by BN2's mean subtraction, so it is not
    # applied (same output as the reference).
    Ho = (H + 2 - 3) // s + 1
    Wo = (W + 2 - 3) // s + 1
    Wq = -(-(W + 2) // s)                       # ceil((W+2)/s)
    extra = Wq * s - (W + 2)
    y1_img = y1_raw.reshape(N, H, W, bdim)
    xpad = jnp.pad(y1_img, ((0, 0), (1, 1), (1, 1 + extra), (0, 0)))
    # parity-split W so stride-s tap reads are static contiguous slices in-kernel
    xps = jnp.transpose(xpad.reshape(N, H + 2, Wq, s, bdim), (0, 1, 3, 2, 4))
    w2r = jnp.transpose(params["w2"], (2, 3, 1, 0)).reshape(9, bdim, bdim)
    w2r = w2r.astype(jnp.bfloat16)

    y2_raw, st2 = pl.pallas_call(
        functools.partial(_conv3x3_row_kernel, stride=s, H=H, W=W, Wo=Wo),
        grid=(N, Ho, 3),
        in_specs=[
            pl.BlockSpec((1, 1, s, Wq, bdim),
                         lambda n, ho, kh: (n, s * ho + kh, 0, 0, 0)),
            pl.BlockSpec((1, bdim), lambda n, ho, kh: (0, 0)),
            pl.BlockSpec((1, bdim), lambda n, ho, kh: (0, 0)),
            pl.BlockSpec((3, bdim, bdim), lambda n, ho, kh: (kh, 0, 0)),
        ],
        out_specs=[
            pl.BlockSpec((1, 1, Wo, bdim), lambda n, ho, kh: (n, ho, 0, 0)),
            pl.BlockSpec((1, 1, 2, bdim), lambda n, ho, kh: (n, ho, 0, 0)),
        ],
        out_shape=[
            jax.ShapeDtypeStruct((N, Ho, Wo, bdim), jnp.float32),
            jax.ShapeDtypeStruct((N, Ho, 2, bdim), jnp.float32),
        ],
        compiler_params=pltpu.CompilerParams(
            dimension_semantics=("parallel", "parallel", "arbitrary"),
            vmem_limit_bytes=_VMEM_LIMIT),
    )(xps, sc1, sh1, w2r)

    M2 = N * Ho * Wo
    sc2, sh2 = _bn_affine(st2, M2, params["g2"], params["b2"])

    # ---- stage 3: BN2+ReLU fused into C3 (1x1, no bias) ---------------------------
    y2_rows = y2_raw.reshape(M2, bdim)
    w3 = jnp.transpose(params["w3"].reshape(outdim, bdim)).astype(jnp.bfloat16)
    t2 = _row_tile(M2)
    y3_raw, st3 = _rows_call(_bn_relu_mm_stats_kernel, M2, t2,
                             [y2_rows], [sc2, sh2, w3], outdim, stats_dim=outdim)
    sc3, sh3 = _bn_affine(st3, M2, params["g3"], params["b3"])

    # ---- final: BN3 + shortcut (1x1 projection fused) + ReLU ----------------------
    if Cin == outdim:
        out_rows = _rows_call(_bn_add_relu_kernel, M2, t2,
                              [y3_raw, a1], [sc3, sh3], outdim)
    else:
        xs = x_nhwc[:, ::s, ::s, :].reshape(M2, Cin)
        ws = jnp.transpose(params["ws"].reshape(outdim, Cin)).astype(jnp.bfloat16)
        out_rows = _rows_call(_bn_proj_add_relu_kernel, M2, t2,
                              [y3_raw, xs], [sc3, sh3, ws], outdim)

    return jnp.transpose(out_rows.reshape(N, Ho, Wo, outdim), (0, 3, 1, 2))


# ---------------------------------------------------------------------------
# Pure-JAX reference (for correctness check)
# ---------------------------------------------------------------------------
def _ref_bn(y, g, b):
    mean = y.mean(axis=(0, 2, 3), keepdims=True)
    var = ((y - mean) ** 2).mean(axis=(0, 2, 3), keepdims=True)
    return (y - mean) / jnp.sqrt(var + EPS) * g.reshape(1, -1, 1, 1) + b.reshape(1, -1, 1, 1)


def _ref_conv(x, w, stride, pad):
    return lax.conv_general_dilated(
        x, w, (stride, stride), pad, dimension_numbers=("NCHW", "OIHW", "NCHW"))


def ref_forward(x, params, half_res):
    s = 2 if half_res else 1
    if x.shape[1] == params["w3"].shape[0]:
        short = x
    else:
        short = _ref_conv(x, params["ws"], s, "VALID")
    out = _ref_conv(x, params["w1"], 1, "VALID")
    out = jnp.maximum(_ref_bn(out, params["g1"], params["b1"]), 0.0)
    out = _ref_conv(out, params["w2"], s, [(1, 1), (1, 1)]) + params["cb2"].reshape(1, -1, 1, 1)
    out = jnp.maximum(_ref_bn(out, params["g2"], params["b2"]), 0.0)
    out = _ref_conv(out, params["w3"], 1, "VALID")
    out = _ref_bn(out, params["g3"], params["b3"])
    return jnp.maximum(out + short, 0.0)


# ---------------------------------------------------------------------------
# Deterministic parameter init (mirrors init_layer: conv ~ N(0, sqrt(2/n)),
# BN gamma=1, beta=0; conv2 bias small uniform)
# ---------------------------------------------------------------------------
def make_params(key, indim, outdim):
    bdim = outdim // 4
    ks = jax.random.split(key, 8)

    def conv_w(k, shape):  # shape = (out, in, kh, kw)
        n = shape[2] * shape[3] * shape[0]
        return jax.random.normal(k, shape, jnp.float32) * jnp.sqrt(2.0 / n)

    params = {
        "w1": conv_w(ks[0], (bdim, indim, 1, 1)),
        "g1": jnp.ones((bdim,), jnp.float32),
        "b1": jnp.zeros((bdim,), jnp.float32),
        "w2": conv_w(ks[1], (bdim, bdim, 3, 3)),
        "cb2": jax.random.uniform(ks[2], (bdim,), jnp.float32, -0.1, 0.1),
        "g2": jnp.ones((bdim,), jnp.float32),
        "b2": jnp.zeros((bdim,), jnp.float32),
        "w3": conv_w(ks[3], (outdim, bdim, 1, 1)),
        "g3": jnp.ones((outdim,), jnp.float32),
        "b3": jnp.zeros((outdim,), jnp.float32),
    }
    if indim != outdim:
        params["ws"] = conv_w(ks[4], (outdim, indim, 1, 1))
    return params


if __name__ == "__main__":
    key = jax.random.PRNGKey(0)
    N, H, W = 2, 8, 8
    configs = [
        (8, 16, True),    # projection shortcut, stride-2 3x3 + stride-2 1x1 shortcut
        (8, 8, False),    # identity shortcut, stride 1
    ]
    for i, (indim, outdim, half_res) in enumerate(configs):
        kx, kp = jax.random.split(jax.random.fold_in(key, i))
        x = jax.random.normal(kx, (N, indim, H, W), jnp.float32)
        params = make_params(kp, indim, outdim)

        fwd = jax.jit(functools.partial(bottleneck_forward, half_res=half_res))
        out = jax.block_until_ready(fwd(x, params))
        ref = jax.block_until_ready(ref_forward(x, params, half_res))

        assert out.shape == ref.shape, (out.shape, ref.shape)
        err = float(jnp.max(jnp.abs(out - ref)))
        # bf16 MXU operands (f32 accumulation) -> looser tolerance than f32 HIGHEST
        assert jnp.allclose(out, ref, rtol=5e-2, atol=5e-2), err

    print("KERNEL_OK")
</pallas_src>

<mosaic_0001>
module attributes {stable_mosaic.version = 11 : i64} {
  func.func @_mm_stats_kernel(%arg0: i32, %arg1: memref<128x8xf32, #tpu.memory_space<vmem>>, %arg2: memref<8x4xbf16, #tpu.memory_space<vmem>>, %arg3: memref<128x4xf32, #tpu.memory_space<vmem>>, %arg4: memref<1x2x4xf32, #tpu.memory_space<vmem>>) attributes {dimension_semantics = [#tpu.dimension_semantics<parallel>], iteration_bounds = array<i64: 1>, scalar_prefetch = 0 : i64, scratch_operands = 0 : i64, tpu.core_type = #tpu.core_type<tc>, window_params = [{transform_indices = @transform_0, window_bounds = array<i64: 128, 8>}, {pipeline_mode = #tpu.pipeline_mode<synchronous>, transform_indices = @transform_1, window_bounds = array<i64: 8, 4>}, {transform_indices = @transform_2, window_bounds = array<i64: 128, 4>}, {transform_indices = @transform_3, window_bounds = array<i64: 1, 2, 4>}]} {
    %c0 = arith.constant 0 : index
    %c0_0 = arith.constant 0 : index
    %0 = vector.load %arg1[%c0, %c0_0] : memref<128x8xf32, #tpu.memory_space<vmem>>, vector<128x8xf32>
    %1 = arith.truncf %0 : vector<128x8xf32> to vector<128x8xbf16>
    %c0_1 = arith.constant 0 : index
    %c0_2 = arith.constant 0 : index
    %2 = vector.load %arg2[%c0_1, %c0_2] : memref<8x4xbf16, #tpu.memory_space<vmem>>, vector<8x4xbf16>
    %cst = arith.constant dense<0.000000e+00> : vector<128x4xf32>
    %3 = tpu.matmul %1, %2, %cst {dimension_numbers = #tpu.dot_dimension_numbers<[1], [0], [0], [1], [0, 0, 1, 1], [], []>} : vector<128x8xbf16>, vector<8x4xbf16>, vector<128x4xf32> -> vector<128x4xf32>
    %c0_3 = arith.constant 0 : index
    %c0_4 = arith.constant 0 : index
    %4 = vector.load %arg3[%c0_3, %c0_4] : memref<128x4xf32, #tpu.memory_space<vmem>>, vector<128x4xf32>
    tpu.vector_store %arg3[%c0_3, %c0_4], %3 {strides = array<i32>} : memref<128x4xf32, #tpu.memory_space<vmem>>, vector<128x4xf32>,
    %cst_5 = arith.constant dense<0.000000e+00> : vector<4xf32>
    %5 = vector.multi_reduction <add>, %3, %cst_5 [0] : vector<128x4xf32> to vector<4xf32>
    %6 = vector.shape_cast %5 : vector<4xf32> to vector<1x4xf32>
    %7 = arith.mulf %3, %3 : vector<128x4xf32>
    %cst_6 = arith.constant dense<0.000000e+00> : vector<4xf32>
    %8 = vector.multi_reduction <add>, %7, %cst_6 [0] : vector<128x4xf32> to vector<4xf32>
    %9 = vector.shape_cast %8 : vector<4xf32> to vector<1x4xf32>
    %10 = tpu.concatenate %6, %9 in 0 : vector<1x4xf32>, vector<1x4xf32> -> vector<2x4xf32>
    %11 = vector.shape_cast %10 : vector<2x4xf32> to vector<1x2x4xf32>
    %c0_7 = arith.constant 0 : index
    %c0_8 = arith.constant 0 : index
    %c0_9 = arith.constant 0 : index
    %12 = vector.load %arg4[%c0_7, %c0_8, %c0_9] : memref<1x2x4xf32, #tpu.memory_space<vmem>>, vector<1x2x4xf32>
    tpu.vector_store %arg4[%c0_7, %c0_8, %c0_9], %11 {strides = array<i32>} : memref<1x2x4xf32, #tpu.memory_space<vmem>>, vector<1x2x4xf32>,
    return
  }
  func.func @transform_0(%arg0: i32) -> (i32, i32) {
    %c0_i32 = arith.constant 0 : i32
    %c0_i32_0 = arith.constant 0 : i32
    return %arg0, %c0_i32 : i32, i32
  }
  func.func @transform_1(%arg0: i32) -> (i32, i32) {
    %c0_i32 = arith.constant 0 : i32
    %c0_i32_0 = arith.constant 0 : i32
    %c0_i32_1 = arith.constant 0 : i32
    return %c0_i32, %c0_i32_0 : i32, i32
  }
  func.func @transform_2(%arg0: i32) -> (i32, i32) {
    %c0_i32 = arith.constant 0 : i32
    %c0_i32_0 = arith.constant 0 : i32
    return %arg0, %c0_i32 : i32, i32
  }
  func.func @transform_3(%arg0: i32) -> (i32, i32, i32) {
    %c0_i32 = arith.constant 0 : i32
    %c0_i32_0 = arith.constant 0 : i32
    %c0_i32_1 = arith.constant 0 : i32
    return %arg0, %c0_i32, %c0_i32_0 : i32, i32, i32
  }
}

module attributes {stable_mosaic.version = 11 : i64} {
  func.func @_conv3x3_row_kernel(%arg0: i32, %arg1: i32, %arg2: i32, %arg3: memref<1x1x2x5x4xf32, #tpu.memory_space<vmem>>, %arg4: memref<1x4xf32, #tpu.memory_space<vmem>>, %arg5: memref<1x4xf32, #tpu.memory_space<vmem>>, %arg6: memref<3x4x4xbf16, #tpu.memory_space<vmem>>, %arg7: memref<1x1x4x4xf32, #tpu.memory_space<vmem>>, %arg8: memref<1x1x2x4xf32, #tpu.memory_space<vmem>>) attributes {dimension_semantics = [#tpu.dimension_semantics<parallel>, #tpu.dimension_semantics<parallel>, #tpu.dimension_semantics<arbitrary>], iteration_bounds = array<i64: 2, 4, 3>, scalar_prefetch = 0 : i64, scratch_operands = 0 : i64, tpu.core_type = #tpu.core_type<tc>, window_params = [{transform_indices = @transform_0, window_bounds = array<i64: 1, 1, 2, 5, 4>}, {pipeline_mode = #tpu.pipeline_mode<synchronous>, transform_indices = @transform_1, window_bounds = array<i64: 1, 4>}, {pipeline_mode = #tpu.pipeline_mode<synchronous>, transform_indices = @transform_2, window_bounds = array<i64: 1, 4>}, {transform_indices = @transform_3, window_bounds = array<i64: 3, 4, 4>}, {transform_indices = @transform_4, window_bounds = array<i64: 1, 1, 4, 4>}, {transform_indices = @transform_5, window_bounds = array<i64: 1, 1, 2, 4>}]} {
    %c2_i32 = arith.constant 2 : i32
    %0 = arith.muli %arg1, %c2_i32 : i32
    %1 = arith.addi %0, %arg2 : i32
    %c0_i32 = arith.constant 0 : i32
    %2 = arith.cmpi eq, %arg2, %c0_i32 : i32
    %3 = arith.extui %2 : i1 to i32
    %c0_i32_0 = arith.constant 0 : i32
    %4 = arith.cmpi ne, %3, %c0_i32_0 : i32
    scf.if %4 {
      %cst_34 = arith.constant 0.000000e+00 : f32
      %62 = vector.broadcast %cst_34 : f32 to vector<1x1x4x4xf32>
      %c0_35 = arith.constant 0 : index
      %c0_36 = arith.constant 0 : index
      %c0_37 = arith.constant 0 : index
      %c0_38 = arith.constant 0 : index
      %63 = vector.load %arg7[%c0_35, %c0_36, %c0_37, %c0_38] : memref<1x1x4x4xf32, #tpu.memory_space<vmem>>, vector<1x1x4x4xf32>
      tpu.vector_store %arg7[%c0_35, %c0_36, %c0_37, %c0_38], %62 {strides = array<i32>} : memref<1x1x4x4xf32, #tpu.memory_space<vmem>>, vector<1x1x4x4xf32>,
    } else {
    }
    %c0 = arith.constant 0 : index
    %c0_1 = arith.constant 0 : index
    %c0_2 = arith.constant 0 : index
    %c0_3 = arith.constant 0 : index
    %c0_4 = arith.constant 0 : index
    %5 = vector.load %arg3[%c0, %c0_1, %c0_2, %c0_3, %c0_4] : memref<1x1x2x5x4xf32, #tpu.memory_space<vmem>>, vector<1x1x2x5x4xf32>
    %6 = vector.shape_cast %5 : vector<1x1x2x5x4xf32> to vector<2x5x4xf32>
    %c0_5 = arith.constant 0 : index
    %c0_6 = arith.constant 0 : index
    %7 = vector.load %arg4[%c0_5, %c0_6] : memref<1x4xf32, #tpu.memory_space<vmem>>, vector<1x4xf32>
    %8 = vector.shape_cast %7 : vector<1x4xf32> to vector<1x1x4xf32>
    %9 = vector.broadcast %8 : vector<1x1x4xf32> to vector<2x5x4xf32>
    %10 = arith.mulf %6, %9 : vector<2x5x4xf32>
    %c0_7 = arith.constant 0 : index
    %c0_8 = arith.constant 0 : index
    %11 = vector.load %arg5[%c0_7, %c0_8] : memref<1x4xf32, #tpu.memory_space<vmem>>, vector<1x4xf32>
    %12 = vector.shape_cast %11 : vector<1x4xf32> to vector<1x1x4xf32>
    %13 = vector.broadcast %12 : vector<1x1x4xf32> to vector<2x5x4xf32>
    %14 = arith.addf %10, %13 : vector<2x5x4xf32>
    %cst = arith.constant 0.000000e+00 : f32
    %15 = vector.broadcast %cst : f32 to vector<2x5x4xf32>
    %16 = arith.maximumf %14, %15 : vector<2x5x4xf32>
    %17 = tpu.iota {dimensions = array<i32: 0>} : vector<2x5x4xi32>
    %18 = tpu.iota {dimensions = array<i32: 1>} : vector<2x5x4xi32>
    %c2_i32_9 = arith.constant 2 : i32
    %19 = vector.broadcast %c2_i32_9 : i32 to vector<2x5x4xi32>
    %20 = arith.muli %18, %19 : vector<2x5x4xi32>
    %21 = arith.addi %20, %17 : vector<2x5x4xi32>
    %c1_i32 = arith.constant 1 : i32
    %22 = vector.broadcast %c1_i32 : i32 to vector<2x5x4xi32>
    %23 = arith.cmpi sge, %21, %22 : vector<2x5x4xi32>
    %c8_i32 = arith.constant 8 : i32
    %24 = vector.broadcast %c8_i32 : i32 to vector<2x5x4xi32>
    %25 = arith.cmpi sle, %21, %24 : vector<2x5x4xi32>
    %26 = arith.andi %23, %25 : vector<2x5x4xi1>
    %c1_i32_10 = arith.constant 1 : i32
    %27 = arith.cmpi sge, %1, %c1_i32_10 : i32
    %28 = vector.broadcast %27 : i1 to vector<2x5x4xi1>
    %29 = arith.andi %26, %28 : vector<2x5x4xi1>
    %c8_i32_11 = arith.constant 8 : i32
    %30 = arith.cmpi sle, %1, %c8_i32_11 : i32
    %31 = vector.broadcast %30 : i1 to vector<2x5x4xi1>
    %32 = arith.andi %29, %31 : vector<2x5x4xi1>
    %cst_12 = arith.constant 0.000000e+00 : f32
    %33 = vector.broadcast %cst_12 : f32 to vector<2x5x4xf32>
    %34 = arith.select %32, %16, %33 : vector<2x5x4xi1>, vector<2x5x4xf32>
    %35 = arith.truncf %34 : vector<2x5x4xf32> to vector<2x5x4xbf16>
    %cst_13 = arith.constant 0.000000e+00 : f32
    %36 = vector.broadcast %cst_13 : f32 to vector<4x4xf32>
    %37 = vector.extract_strided_slice %35 {offsets = [0, 0, 0], sizes = [1, 4, 4], strides = [1, 1, 1]} : vector<2x5x4xbf16> to vector<1x4x4xbf16>
    %38 = vector.shape_cast %37 : vector<1x4x4xbf16> to vector<4x4xbf16>
    %c0_14 = arith.constant 0 : index
    %c0_15 = arith.constant 0 : index
    %c0_16 = arith.constant 0 : index
    %39 = vector.load %arg6[%c0_14, %c0_15, %c0_16] : memref<3x4x4xbf16, #tpu.memory_space<vmem>>, vector<1x4x4xbf16>
    %40 = vector.shape_cast %39 : vector<1x4x4xbf16> to vector<4x4xbf16>
    %cst_17 = arith.constant dense<0.000000e+00> : vector<4x4xf32>
    %41 = tpu.matmul %38, %40, %cst_17 {dimension_numbers = #tpu.dot_dimension_numbers<[1], [0], [0], [1], [0, 0, 1, 1], [], []>} : vector<4x4xbf16>, vector<4x4xbf16>, vector<4x4xf32> -> vector<4x4xf32>
    %42 = arith.addf %36, %41 : vector<4x4xf32>
    %43 = vector.extract_strided_slice %35 {offsets = [1, 0, 0], sizes = [1, 4, 4], strides = [1, 1, 1]} : vector<2x5x4xbf16> to vector<1x4x4xbf16>
    %44 = vector.shape_cast %43 : vector<1x4x4xbf16> to vector<4x4xbf16>
    %c1 = arith.constant 1 : index
    %c0_18 = arith.constant 0 : index
    %c0_19 = arith.constant 0 : index
    %45 = vector.load %arg6[%c1, %c0_18, %c0_19] : memref<3x4x4xbf16, #tpu.memory_space<vmem>>, vector<1x4x4xbf16>
    %46 = vector.shape_cast %45 : vector<1x4x4xbf16> to vector<4x4xbf16>
    %cst_20 = arith.constant dense<0.000000e+00> : vector<4x4xf32>
    %47 = tpu.matmul %44, %46, %cst_20 {dimension_numbers = #tpu.dot_dimension_numbers<[1], [0], [0], [1], [0, 0, 1, 1], [], []>} : vector<4x4xbf16>, vector<4x4xbf16>, vector<4x4xf32> -> vector<4x4xf32>
    %48 = arith.addf %42, %47 : vector<4x4xf32>
    %49 = vector.extract_strided_slice %35 {offsets = [0, 1, 0], sizes = [1, 4, 4], strides = [1, 1, 1]} : vector<2x5x4xbf16> to vector<1x4x4xbf16>
    %50 = vector.shape_cast %49 : vector<1x4x4xbf16> to vector<4x4xbf16>
    %c2 = arith.constant 2 : index
    %c0_21 = arith.constant 0 : index
    %c0_22 = arith.constant 0 : index
    %51 = vector.load %arg6[%c2, %c0_21, %c0_22] : memref<3x4x4xbf16, #tpu.memory_space<vmem>>, vector<1x4x4xbf16>
    %52 = vector.shape_cast %51 : vector<1x4x4xbf16> to vector<4x4xbf16>
    %cst_23 = arith.constant dense<0.000000e+00> : vector<4x4xf32>
    %53 = tpu.matmul %50, %52, %cst_23 {dimension_numbers = #tpu.dot_dimension_numbers<[1], [0], [0], [1], [0, 0, 1, 1], [], []>} : vector<4x4xbf16>, vector<4x4xbf16>, vector<4x4xf32> -> vector<4x4xf32>
    %54 = arith.addf %48, %53 : vector<4x4xf32>
    %c0_24 = arith.constant 0 : index
    %c0_25 = arith.constant 0 : index
    %c0_26 = arith.constant 0 : index
    %c0_27 = arith.constant 0 : index
    %55 = vector.load %arg7[%c0_24, %c0_25, %c0_26, %c0_27] : memref<1x1x4x4xf32, #tpu.memory_space<vmem>>, vector<1x1x4x4xf32>
    %56 = vector.shape_cast %54 : vector<4x4xf32> to vector<1x1x4x4xf32>
    %57 = arith.addf %55, %56 : vector<1x1x4x4xf32>
    %c0_28 = arith.constant 0 : index
    %c0_29 = arith.constant 0 : index
    %c0_30 = arith.constant 0 : index
    %c0_31 = arith.constant 0 : index
    %58 = vector.load %arg7[%c0_28, %c0_29, %c0_30, %c0_31] : memref<1x1x4x4xf32, #tpu.memory_space<vmem>>, vector<1x1x4x4xf32>
    tpu.vector_store %arg7[%c0_28, %c0_29, %c0_30, %c0_31], %57 {strides = array<i32>} : memref<1x1x4x4xf32, #tpu.memory_space<vmem>>, vector<1x1x4x4xf32>,
    %c2_i32_32 = arith.constant 2 : i32
    %59 = arith.cmpi eq, %arg2, %c2_i32_32 : i32
    %60 = arith.extui %59 : i1 to i32
    %c0_i32_33 = arith.constant 0 : i32
    %61 = arith.cmpi ne, %60, %c0_i32_33 : i32
    scf.if %61 {
      %c0_34 = arith.constant 0 : index
      %c0_35 = arith.constant 0 : index
      %c0_36 = arith.constant 0 : index
      %c0_37 = arith.constant 0 : index
      %62 = vector.load %arg7[%c0_34, %c0_35, %c0_36, %c0_37] : memref<1x1x4x4xf32, #tpu.memory_space<vmem>>, vector<1x1x4x4xf32>
      %63 = vector.shape_cast %62 : vector<1x1x4x4xf32> to vector<4x4xf32>
      %cst_38 = arith.constant dense<0.000000e+00> : vector<4xf32>
      %64 = vector.multi_reduction <add>, %63, %cst_38 [0] : vector<4x4xf32> to vector<4xf32>
      %65 = vector.shape_cast %64 : vector<4xf32> to vector<1x4xf32>
      %66 = arith.mulf %63, %63 : vector<4x4xf32>
      %cst_39 = arith.constant dense<0.000000e+00> : vector<4xf32>
      %67 = vector.multi_reduction <add>, %66, %cst_39 [0] : vector<4x4xf32> to vector<4xf32>
      %68 = vector.shape_cast %67 : vector<4xf32> to vector<1x4xf32>
      %69 = tpu.concatenate %65, %68 in 0 : vector<1x4xf32>, vector<1x4xf32> -> vector<2x4xf32>
      %70 = vector.shape_cast %69 : vector<2x4xf32> to vector<1x1x2x4xf32>
      %c0_40 = arith.constant 0 : index
      %c0_41 = arith.constant 0 : index
      %c0_42 = arith.constant 0 : index
      %c0_43 = arith.constant 0 : index
      %71 = vector.load %arg8[%c0_40, %c0_41, %c0_42, %c0_43] : memref<1x1x2x4xf32, #tpu.memory_space<vmem>>, vector<1x1x2x4xf32>
      tpu.vector_store %arg8[%c0_40, %c0_41, %c0_42, %c0_43], %70 {strides = array<i32>} : memref<1x1x2x4xf32, #tpu.memory_space<vmem>>, vector<1x1x2x4xf32>,
    } else {
    }
    return
  }
  func.func @transform_0(%arg0: i32, %arg1: i32, %arg2: i32) -> (i32, i32, i32, i32, i32) {
    %c2_i32 = arith.constant 2 : i32
    %0 = arith.muli %c2_i32, %arg1 : i32
    %1 = arith.addi %0, %arg2 : i32
    %c0_i32 = arith.constant 0 : i32
    %c0_i32_0 = arith.constant 0 : i32
    %c0_i32_1 = arith.constant 0 : i32
    %c0_i32_2 = arith.constant 0 : i32
    return %arg0, %1, %c0_i32, %c0_i32_0, %c0_i32_1 : i32, i32, i32, i32, i32
  }
  func.func @transform_1(%arg0: i32, %arg1: i32, %arg2: i32) -> (i32, i32) {
    %c0_i32 = arith.constant 0 : i32
    %c0_i32_0 = arith.constant 0 : i32
    %c0_i32_1 = arith.constant 0 : i32
    return %c0_i32, %c0_i32_0 : i32, i32
  }
  func.func @transform_2(%arg0: i32, %arg1: i32, %arg2: i32) -> (i32, i32) {
    %c0_i32 = arith.constant 0 : i32
    %c0_i32_0 = arith.constant 0 : i32
    %c0_i32_1 = arith.constant 0 : i32
    return %c0_i32, %c0_i32_0 : i32, i32
  }
  func.func @transform_3(%arg0: i32, %arg1: i32, %arg2: i32) -> (i32, i32, i32) {
    %c0_i32 = arith.constant 0 : i32
    %c0_i32_0 = arith.constant 0 : i32
    %c0_i32_1 = arith.constant 0 : i32
    return %arg2, %c0_i32, %c0_i32_0 : i32, i32, i32
  }
  func.func @transform_4(%arg0: i32, %arg1: i32, %arg2: i32) -> (i32, i32, i32, i32) {
    %c0_i32 = arith.constant 0 : i32
    %c0_i32_0 = arith.constant 0 : i32
    %c0_i32_1 = arith.constant 0 : i32
    return %arg0, %arg1, %c0_i32, %c0_i32_0 : i32, i32, i32, i32
  }
  func.func @transform_5(%arg0: i32, %arg1: i32, %arg2: i32) -> (i32, i32, i32, i32) {
    %c0_i32 = arith.constant 0 : i32
    %c0_i32_0 = arith.constant 0 : i32
    %c0_i32_1 = arith.constant 0 : i32
    return %arg0, %arg1, %c0_i32, %c0_i32_0 : i32, i32, i32, i32
  }
}

module attributes {stable_mosaic.version = 11 : i64} {
  func.func @_bn_relu_mm_stats_kernel(%arg0: i32, %arg1: memref<32x4xf32, #tpu.memory_space<vmem>>, %arg2: memref<1x4xf32, #tpu.memory_space<vmem>>, %arg3: memref<1x4xf32, #tpu.memory_space<vmem>>, %arg4: memref<4x16xbf16, #tpu.memory_space<vmem>>, %arg5: memref<32x16xf32, #tpu.memory_space<vmem>>, %arg6: memref<1x2x16xf32, #tpu.memory_space<vmem>>) attributes {dimension_semantics = [#tpu.dimension_semantics<parallel>], iteration_bounds = array<i64: 1>, scalar_prefetch = 0 : i64, scratch_operands = 0 : i64, tpu.core_type = #tpu.core_type<tc>, window_params = [{transform_indices = @transform_0, window_bounds = array<i64: 32, 4>}, {pipeline_mode = #tpu.pipeline_mode<synchronous>, transform_indices = @transform_1, window_bounds = array<i64: 1, 4>}, {pipeline_mode = #tpu.pipeline_mode<synchronous>, transform_indices = @transform_2, window_bounds = array<i64: 1, 4>}, {pipeline_mode = #tpu.pipeline_mode<synchronous>, transform_indices = @transform_3, window_bounds = array<i64: 4, 16>}, {transform_indices = @transform_4, window_bounds = array<i64: 32, 16>}, {transform_indices = @transform_5, window_bounds = array<i64: 1, 2, 16>}]} {
    %c0 = arith.constant 0 : index
    %c0_0 = arith.constant 0 : index
    %0 = vector.load %arg1[%c0, %c0_0] : memref<32x4xf32, #tpu.memory_space<vmem>>, vector<32x4xf32>
    %c0_1 = arith.constant 0 : index
    %c0_2 = arith.constant 0 : index
    %1 = vector.load %arg2[%c0_1, %c0_2] : memref<1x4xf32, #tpu.memory_space<vmem>>, vector<1x4xf32>
    %2 = vector.broadcast %1 : vector<1x4xf32> to vector<32x4xf32>
    %3 = arith.mulf %0, %2 : vector<32x4xf32>
    %c0_3 = arith.constant 0 : index
    %c0_4 = arith.constant 0 : index
    %4 = vector.load %arg3[%c0_3, %c0_4] : memref<1x4xf32, #tpu.memory_space<vmem>>, vector<1x4xf32>
    %5 = vector.broadcast %4 : vector<1x4xf32> to vector<32x4xf32>
    %6 = arith.addf %3, %5 : vector<32x4xf32>
    %cst = arith.constant 0.000000e+00 : f32
    %7 = vector.broadcast %cst : f32 to vector<32x4xf32>
    %8 = arith.maximumf %6, %7 : vector<32x4xf32>
    %9 = arith.truncf %8 : vector<32x4xf32> to vector<32x4xbf16>
    %c0_5 = arith.constant 0 : index
    %c0_6 = arith.constant 0 : index
    %10 = vector.load %arg4[%c0_5, %c0_6] : memref<4x16xbf16, #tpu.memory_space<vmem>>, vector<4x16xbf16>
    %cst_7 = arith.constant dense<0.000000e+00> : vector<32x16xf32>
    %11 = tpu.matmul %9, %10, %cst_7 {dimension_numbers = #tpu.dot_dimension_numbers<[1], [0], [0], [1], [0, 0, 1, 1], [], []>} : vector<32x4xbf16>, vector<4x16xbf16>, vector<32x16xf32> -> vector<32x16xf32>
    %c0_8 = arith.constant 0 : index
    %c0_9 = arith.constant 0 : index
    %12 = vector.load %arg5[%c0_8, %c0_9] : memref<32x16xf32, #tpu.memory_space<vmem>>, vector<32x16xf32>
    tpu.vector_store %arg5[%c0_8, %c0_9], %11 {strides = array<i32>} : memref<32x16xf32, #tpu.memory_space<vmem>>, vector<32x16xf32>,
    %cst_10 = arith.constant dense<0.000000e+00> : vector<16xf32>
    %13 = vector.multi_reduction <add>, %11, %cst_10 [0] : vector<32x16xf32> to vector<16xf32>
    %14 = vector.shape_cast %13 : vector<16xf32> to vector<1x16xf32>
    %15 = arith.mulf %11, %11 : vector<32x16xf32>
    %cst_11 = arith.constant dense<0.000000e+00> : vector<16xf32>
    %16 = vector.multi_reduction <add>, %15, %cst_11 [0] : vector<32x16xf32> to vector<16xf32>
    %17 = vector.shape_cast %16 : vector<16xf32> to vector<1x16xf32>
    %18 = tpu.concatenate %14, %17 in 0 : vector<1x16xf32>, vector<1x16xf32> -> vector<2x16xf32>
    %19 = vector.shape_cast %18 : vector<2x16xf32> to vector<1x2x16xf32>
    %c0_12 = arith.constant 0 : index
    %c0_13 = arith.constant 0 : index
    %c0_14 = arith.constant 0 : index
    %20 = vector.load %arg6[%c0_12, %c0_13, %c0_14] : memref<1x2x16xf32, #tpu.memory_space<vmem>>, vector<1x2x16xf32>
    tpu.vector_store %arg6[%c0_12, %c0_13, %c0_14], %19 {strides = array<i32>} : memref<1x2x16xf32, #tpu.memory_space<vmem>>, vector<1x2x16xf32>,
    return
  }
  func.func @transform_0(%arg0: i32) -> (i32, i32) {
    %c0_i32 = arith.constant 0 : i32
    %c0_i32_0 = arith.constant 0 : i32
    return %arg0, %c0_i32 : i32, i32
  }
  func.func @transform_1(%arg0: i32) -> (i32, i32) {
    %c0_i32 = arith.constant 0 : i32
    %c0_i32_0 = arith.constant 0 : i32
    %c0_i32_1 = arith.constant 0 : i32
    return %c0_i32, %c0_i32_0 : i32, i32
  }
  func.func @transform_2(%arg0: i32) -> (i32, i32) {
    %c0_i32 = arith.constant 0 : i32
    %c0_i32_0 = arith.constant 0 : i32
    %c0_i32_1 = arith.constant 0 : i32
    return %c0_i32, %c0_i32_0 : i32, i32
  }
  func.func @transform_3(%arg0: i32) -> (i32, i32) {
    %c0_i32 = arith.constant 0 : i32
    %c0_i32_0 = arith.constant 0 : i32
    %c0_i32_1 = arith.constant 0 : i32
    return %c0_i32, %c0_i32_0 : i32, i32
  }
  func.func @transform_4(%arg0: i32) -> (i32, i32) {
    %c0_i32 = arith.constant 0 : i32
    %c0_i32_0 = arith.constant 0 : i32
    return %arg0, %c0_i32 : i32, i32
  }
  func.func @transform_5(%arg0: i32) -> (i32, i32, i32) {
    %c0_i32 = arith.constant 0 : i32
    %c0_i32_0 = arith.constant 0 : i32
    %c0_i32_1 = arith.constant 0 : i32
    return %arg0, %c0_i32, %c0_i32_0 : i32, i32, i32
  }
}

module attributes {stable_mosaic.version = 11 : i64} {
  func.func @_bn_proj_add_relu_kernel(%arg0: i32, %arg1: memref<32x16xf32, #tpu.memory_space<vmem>>, %arg2: memref<32x8xf32, #tpu.memory_space<vmem>>, %arg3: memref<1x16xf32, #tpu.memory_space<vmem>>, %arg4: memref<1x16xf32, #tpu.memory_space<vmem>>, %arg5: memref<8x16xbf16, #tpu.memory_space<vmem>>, %arg6: memref<32x16xf32, #tpu.memory_space<vmem>>) attributes {dimension_semantics = [#tpu.dimension_semantics<parallel>], iteration_bounds = array<i64: 1>, scalar_prefetch = 0 : i64, scratch_operands = 0 : i64, tpu.core_type = #tpu.core_type<tc>, window_params = [{transform_indices = @transform_0, window_bounds = array<i64: 32, 16>}, {transform_indices = @transform_1, window_bounds = array<i64: 32, 8>}, {pipeline_mode = #tpu.pipeline_mode<synchronous>, transform_indices = @transform_2, window_bounds = array<i64: 1, 16>}, {pipeline_mode = #tpu.pipeline_mode<synchronous>, transform_indices = @transform_3, window_bounds = array<i64: 1, 16>}, {pipeline_mode = #tpu.pipeline_mode<synchronous>, transform_indices = @transform_4, window_bounds = array<i64: 8, 16>}, {transform_indices = @transform_5, window_bounds = array<i64: 32, 16>}]} {
    %c0 = arith.constant 0 : index
    %c0_0 = arith.constant 0 : index
    %0 = vector.load %arg2[%c0, %c0_0] : memref<32x8xf32, #tpu.memory_space<vmem>>, vector<32x8xf32>
    %1 = arith.truncf %0 : vector<32x8xf32> to vector<32x8xbf16>
    %c0_1 = arith.constant 0 : index
    %c0_2 = arith.constant 0 : index
    %2 = vector.load %arg5[%c0_1, %c0_2] : memref<8x16xbf16, #tpu.memory_space<vmem>>, vector<8x16xbf16>
    %cst = arith.constant dense<0.000000e+00> : vector<32x16xf32>
    %3 = tpu.matmul %1, %2, %cst {dimension_numbers = #tpu.dot_dimension_numbers<[1], [0], [0], [1], [0, 0, 1, 1], [], []>} : vector<32x8xbf16>, vector<8x16xbf16>, vector<32x16xf32> -> vector<32x16xf32>
    %c0_3 = arith.constant 0 : index
    %c0_4 = arith.constant 0 : index
    %4 = vector.load %arg1[%c0_3, %c0_4] : memref<32x16xf32, #tpu.memory_space<vmem>>, vector<32x16xf32>
    %c0_5 = arith.constant 0 : index
    %c0_6 = arith.constant 0 : index
    %5 = vector.load %arg3[%c0_5, %c0_6] : memref<1x16xf32, #tpu.memory_space<vmem>>, vector<1x16xf32>
    %6 = vector.broadcast %5 : vector<1x16xf32> to vector<32x16xf32>
    %7 = arith.mulf %4, %6 : vector<32x16xf32>
    %c0_7 = arith.constant 0 : index
    %c0_8 = arith.constant 0 : index
    %8 = vector.load %arg4[%c0_7, %c0_8] : memref<1x16xf32, #tpu.memory_space<vmem>>, vector<1x16xf32>
    %9 = vector.broadcast %8 : vector<1x16xf32> to vector<32x16xf32>
    %10 = arith.addf %7, %9 : vector<32x16xf32>
    %11 = arith.addf %10, %3 : vector<32x16xf32>
    %cst_9 = arith.constant 0.000000e+00 : f32
    %12 = vector.broadcast %cst_9 : f32 to vector<32x16xf32>
    %13 = arith.maximumf %11, %12 : vector<32x16xf32>
    %c0_10 = arith.constant 0 : index
    %c0_11 = arith.constant 0 : index
    %14 = vector.load %arg6[%c0_10, %c0_11] : memref<32x16xf32, #tpu.memory_space<vmem>>, vector<32x16xf32>
    tpu.vector_store %arg6[%c0_10, %c0_11], %13 {strides = array<i32>} : memref<32x16xf32, #tpu.memory_space<vmem>>, vector<32x16xf32>,
    return
  }
  func.func @transform_0(%arg0: i32) -> (i32, i32) {
    %c0_i32 = arith.constant 0 : i32
    %c0_i32_0 = arith.constant 0 : i32
    return %arg0, %c0_i32 : i32, i32
  }
  func.func @transform_1(%arg0: i32) -> (i32, i32) {
    %c0_i32 = arith.constant 0 : i32
    %c0_i32_0 = arith.constant 0 : i32
    return %arg0, %c0_i32 : i32, i32
  }
  func.func @transform_2(%arg0: i32) -> (i32, i32) {
    %c0_i32 = arith.constant 0 : i32
    %c0_i32_0 = arith.constant 0 : i32
    %c0_i32_1 = arith.constant 0 : i32
    return %c0_i32, %c0_i32_0 : i32, i32
  }
  func.func @transform_3(%arg0: i32) -> (i32, i32) {
    %c0_i32 = arith.constant 0 : i32
    %c0_i32_0 = arith.constant 0 : i32
    %c0_i32_1 = arith.constant 0 : i32
    return %c0_i32, %c0_i32_0 : i32, i32
  }
  func.func @transform_4(%arg0: i32) -> (i32, i32) {
    %c0_i32 = arith.constant 0 : i32
    %c0_i32_0 = arith.constant 0 : i32
    %c0_i32_1 = arith.constant 0 : i32
    return %c0_i32, %c0_i32_0 : i32, i32
  }
  func.func @transform_5(%arg0: i32) -> (i32, i32) {
    %c0_i32 = arith.constant 0 : i32
    %c0_i32_0 = arith.constant 0 : i32
    return %arg0, %c0_i32 : i32, i32
  }
}

</mosaic_0001>

<llo_original>
// kernel: bottleneck_forward.4
$region0: #{bottleneck_forward.4}
  #allocation0 [shape = 'u32[]', space=smem, size = 0x4, offset = 0x4, fixed_abs, tag = 'smem constant byte address 0x4 - core index']
  #allocation1 [shape = 'u32[72,128]{1,0:T(1,128)}', space=vmem, size = 0x9000, scoped, tag = 'internal scratch']
  %s0 = inlined_call_operand.vmem [shape: f32[128,8], index: 0, kind: input, shape index: {}]
  %s1 = inlined_call_operand.vmem [shape: bf16[8,4], index: 1, kind: input, shape index: {}]
  %s2 = inlined_call_operand.vmem [shape: f32[128,4], index: 2, kind: output, shape index: {0}]
  %s3 = inlined_call_operand.vmem [shape: f32[1,2,4], index: 3, kind: output, shape index: {1}]
  %4 = xla_tuple %s2, %s3
  %s5 = sld [smem:[#allocation0]]
  $region26: #{bottleneck_forward.4} parent=0
    _
  %s7 = ssub.s32 1, %s5
  %s8 = scalar_select 0, %s7, %s5
  // Predicated region
  $region2: #{bottleneck_forward.4} parent=0 // pred_check
    _
  $region3: #{bottleneck_forward.4} parent=0 // pred_check_branch
    %10 = sbr.rel (0) target = $region5
  $region4: #{bottleneck_forward.4} parent=0 // pred_region
    _
  $region5: #{bottleneck_forward.4} parent=0 // pred_fallthru
    _
  // Predicated region
  $region6: #{bottleneck_forward.4} parent=0 // pred_check
    _
  $region7: #{bottleneck_forward.4} parent=0 // pred_check_branch
    %12 = sbr.rel (0) target = $region9
  $region8: #{bottleneck_forward.4} parent=0 // pred_region
    _
  $region9: #{bottleneck_forward.4} parent=0 // pred_fallthru
    _
  %v14 = vld [vmem:[%s0] sm:$0xff]
  %v15 = vld [vmem:[%s0 + $0x8] sm:$0xff]
  %v16 = vld [vmem:[%s0 + $0x10] sm:$0xff]
  %v17 = vld [vmem:[%s0 + $0x18] sm:$0xff]
  %v18 = vld [vmem:[%s0 + $0x20] sm:$0xff]
  %v19 = vld [vmem:[%s0 + $0x28] sm:$0xff]
  %v20 = vld [vmem:[%s0 + $0x30] sm:$0xff]
  %v21 = vld [vmem:[%s0 + $0x38] sm:$0xff]
  %v22 = vld [vmem:[%s0 + $0x40] sm:$0xff]
  %v23 = vld [vmem:[%s0 + $0x48] sm:$0xff]
  %v24 = vld [vmem:[%s0 + $0x50] sm:$0xff]
  %v25 = vld [vmem:[%s0 + $0x58] sm:$0xff]
  %v26 = vld [vmem:[%s0 + $0x60] sm:$0xff]
  %v27 = vld [vmem:[%s0 + $0x68] sm:$0xff]
  %v28 = vld [vmem:[%s0 + $0x70] sm:$0xff]
  %v29 = vld [vmem:[%s0 + $0x78] sm:$0xff]
  %v30 = vpack.c.bf16 %v15, %v14
  %v31 = vpack.c.bf16 %v17, %v16
  %v32 = vpack.c.bf16 %v19, %v18
  %v33 = vpack.c.bf16 %v21, %v20
  %v34 = vpack.c.bf16 %v23, %v22
  %v35 = vpack.c.bf16 %v25, %v24
  %v36 = vpack.c.bf16 %v27, %v26
  %v37 = vpack.c.bf16 %v29, %v28
  %v38 = vld [vmem:[%s1] sm:$0xf]
  %vm39 = vcmask 64512
  %v41 = vsel %vm39, %v30, 0
  %v44 = vsel %vm39, %v31, 0
  %v47 = vsel %vm39, %v32, 0
  %v50 = vsel %vm39, %v33, 0
  %v53 = vsel %vm39, %v34, 0
  %v56 = vsel %vm39, %v35, 0
  %v59 = vsel %vm39, %v36, 0
  %v62 = vsel %vm39, %v37, 0
  %vm64 = vcmask 1043456
  %v66 = vsel %vm64, %v38, 0
  %68 = vmatpush.bf16.msra.mxu0 0
  %69 = vmatpush.bf16.msra.mxu0 0
  %70 = vmatpush.bf16.msra.mxu0 0
  %71 = vmatpush.bf16.msra.mxu0 0
  %72 = vmatpush.bf16.msra.mxu0 0
  %73 = vmatpush.bf16.msra.mxu0 0
  %74 = vmatpush.bf16.msra.mxu0 0
  %75 = vmatpush.bf16.msra.mxu0 %v66
  %76 = vmatmul.bf16.gmra.mxu0 %v41
  %v77 = vpop.f32.mrf.mxu0
  %v78 = vadd.f32 0.0, %v77
  %v79 = vpop.f32.mrf.mxu0
  %v80 = vadd.f32 0.0, %v79
  %81 = vmatmul.bf16.gmra.mxu0 %v44
  %v82 = vpop.f32.mrf.mxu0
  %v83 = vadd.f32 0.0, %v82
  %v84 = vpop.f32.mrf.mxu0
  %v85 = vadd.f32 0.0, %v84
  %86 = vmatmul.bf16.gmra.mxu0 %v47
  %v87 = vpop.f32.mrf.mxu0
  %v88 = vadd.f32 0.0, %v87
  %v89 = vpop.f32.mrf.mxu0
  %v90 = vadd.f32 0.0, %v89
  %91 = vmatmul.bf16.gmra.mxu0 %v50
  %v92 = vpop.f32.mrf.mxu0
  %v93 = vadd.f32 0.0, %v92
  %v94 = vpop.f32.mrf.mxu0
  %v95 = vadd.f32 0.0, %v94
  %96 = vmatmul.bf16.gmra.mxu0 %v53
  %v97 = vpop.f32.mrf.mxu0
  %v98 = vadd.f32 0.0, %v97
  %v99 = vpop.f32.mrf.mxu0
  %v100 = vadd.f32 0.0, %v99
  %101 = vmatmul.bf16.gmra.mxu0 %v56
  %v102 = vpop.f32.mrf.mxu0
  %v103 = vadd.f32 0.0, %v102
  %v104 = vpop.f32.mrf.mxu0
  %v105 = vadd.f32 0.0, %v104
  %106 = vmatmul.bf16.gmra.mxu0 %v59
  %v107 = vpop.f32.mrf.mxu0
  %v108 = vadd.f32 0.0, %v107
  %v109 = vpop.f32.mrf.mxu0
  %v110 = vadd.f32 0.0, %v109
  %111 = vmatmul.bf16.gmra.mxu0 %v62
  %v112 = vpop.f32.mrf.mxu0
  %v113 = vadd.f32 0.0, %v112
  %v114 = vpop.f32.mrf.mxu0
  %v115 = vadd.f32 0.0, %v114
  %116 = vdwg.mxu0
  %vm117 = vcmask 31744
  %118 = vst.msk [vmem:[%s2] sm:$0xff] %vm117, %v78
  %119 = vst.msk [vmem:[%s2 + $0x8] sm:$0xff] %vm117, %v80
  %120 = vst.msk [vmem:[%s2 + $0x10] sm:$0xff] %vm117, %v83
  %121 = vst.msk [vmem:[%s2 + $0x18] sm:$0xff] %vm117, %v85
  %122 = vst.msk [vmem:[%s2 + $0x20] sm:$0xff] %vm117, %v88
  %123 = vst.msk [vmem:[%s2 + $0x28] sm:$0xff] %vm117, %v90
  %124 = vst.msk [vmem:[%s2 + $0x30] sm:$0xff] %vm117, %v93
  %125 = vst.msk [vmem:[%s2 + $0x38] sm:$0xff] %vm117, %v95
  %126 = vst.msk [vmem:[%s2 + $0x40] sm:$0xff] %vm117, %v98
  %127 = vst.msk [vmem:[%s2 + $0x48] sm:$0xff] %vm117, %v100
  %128 = vst.msk [vmem:[%s2 + $0x50] sm:$0xff] %vm117, %v103
  %129 = vst.msk [vmem:[%s2 + $0x58] sm:$0xff] %vm117, %v105
  %130 = vst.msk [vmem:[%s2 + $0x60] sm:$0xff] %vm117, %v108
  %131 = vst.msk [vmem:[%s2 + $0x68] sm:$0xff] %vm117, %v110
  %132 = vst.msk [vmem:[%s2 + $0x70] sm:$0xff] %vm117, %v113
  %133 = vst.msk [vmem:[%s2 + $0x78] sm:$0xff] %vm117, %v115
  %v134 = vsel %vm117, %v78, 0.0
  %v135 = vsel %vm117, %v80, 0.0
  %v136 = vadd.f32 %v134, %v135
  %v137 = vsel %vm117, %v83, 0.0
  %v138 = vadd.f32 %v136, %v137
  %v139 = vsel %vm117, %v85, 0.0
  %v140 = vadd.f32 %v138, %v139
  %v141 = vsel %vm117, %v88, 0.0
  %v142 = vadd.f32 %v140, %v141
  %v143 = vsel %vm117, %v90, 0.0
  %v144 = vadd.f32 %v142, %v143
  %v145 = vsel %vm117, %v93, 0.0
  %v146 = vadd.f32 %v144, %v145
  %v147 = vsel %vm117, %v95, 0.0
  %v148 = vadd.f32 %v146, %v147
  %v149 = vsel %vm117, %v98, 0.0
  %v150 = vadd.f32 %v148, %v149
  %v151 = vsel %vm117, %v100, 0.0
  %v152 = vadd.f32 %v150, %v151
  %v153 = vsel %vm117, %v103, 0.0
  %v154 = vadd.f32 %v152, %v153
  %v155 = vsel %vm117, %v105, 0.0
  %v156 = vadd.f32 %v154, %v155
  %v157 = vsel %vm117, %v108, 0.0
  %v158 = vadd.f32 %v156, %v157
  %v159 = vsel %vm117, %v110, 0.0
  %v160 = vadd.f32 %v158, %v159
  %v161 = vsel %vm117, %v113, 0.0
  %v162 = vadd.f32 %v160, %v161
  %v163 = vsel %vm117, %v115, 0.0
  %v164 = vadd.f32 %v162, %v163
  %v165 = vrot.slane %v164, 4
  %v166 = vadd.f32 %v164, %v165
  %v167 = vrot.slane %v166, 2
  %v168 = vadd.f32 %v166, %v167
  %v169 = vrot.slane %v168, 1
  %v170 = vadd.f32 %v168, %v169
  %v171 = vmul.f32 %v78, %v78
  %v172 = vmul.f32 %v80, %v80
  %v173 = vmul.f32 %v83, %v83
  %v174 = vmul.f32 %v85, %v85
  %v175 = vmul.f32 %v88, %v88
  %v176 = vmul.f32 %v90, %v90
  %v177 = vmul.f32 %v93, %v93
  %v178 = vmul.f32 %v95, %v95
  %v179 = vmul.f32 %v98, %v98
  %v180 = vmul.f32 %v100, %v100
  %v181 = vmul.f32 %v103, %v103
  %v182 = vmul.f32 %v105, %v105
  %v183 = vmul.f32 %v108, %v108
  %v184 = vmul.f32 %v110, %v110
  %v185 = vmul.f32 %v113, %v113
  %v186 = vmul.f32 %v115, %v115
  %v187 = vsel %vm117, %v171, 0.0
  %v188 = vsel %vm117, %v172, 0.0
  %v189 = vadd.f32 %v187, %v188
  %v190 = vsel %vm117, %v173, 0.0
  %v191 = vadd.f32 %v189, %v190
  %v192 = vsel %vm117, %v174, 0.0
  %v193 = vadd.f32 %v191, %v192
  %v194 = vsel %vm117, %v175, 0.0
  %v195 = vadd.f32 %v193, %v194
  %v196 = vsel %vm117, %v176, 0.0
  %v197 = vadd.f32 %v195, %v196
  %v198 = vsel %vm117, %v177, 0.0
  %v199 = vadd.f32 %v197, %v198
  %v200 = vsel %vm117, %v178, 0.0
  %v201 = vadd.f32 %v199, %v200
  %v202 = vsel %vm117, %v179, 0.0
  %v203 = vadd.f32 %v201, %v202
  %v204 = vsel %vm117, %v180, 0.0
  %v205 = vadd.f32 %v203, %v204
  %v206 = vsel %vm117, %v181, 0.0
  %v207 = vadd.f32 %v205, %v206
  %v208 = vsel %vm117, %v182, 0.0
  %v209 = vadd.f32 %v207, %v208
  %v210 = vsel %vm117, %v183, 0.0
  %v211 = vadd.f32 %v209, %v210
  %v212 = vsel %vm117, %v184, 0.0
  %v213 = vadd.f32 %v211, %v212
  %v214 = vsel %vm117, %v185, 0.0
  %v215 = vadd.f32 %v213, %v214
  %v216 = vsel %vm117, %v186, 0.0
  %v217 = vadd.f32 %v215, %v216
  %v218 = vrot.slane %v217, 4
  %v219 = vadd.f32 %v217, %v218
  %v220 = vrot.slane %v219, 2
  %v221 = vadd.f32 %v219, %v220
  %v222 = vrot.slane %v221, 1
  %v223 = vadd.f32 %v221, %v222
  %vm224 = vcmask 1040384
  %v225 = vsel %vm224, %v170, %v223
  %vm226 = vcmask 25600
  %227 = vst.msk [vmem:[%s3] sm:$0x3] %vm226, %v225
  // Predicated region
  $region10: #{bottleneck_forward.4} parent=0 // pred_check
    _
  $region11: #{bottleneck_forward.4} parent=0 // pred_check_branch
    %229 = sbr.rel (0) target = $region13
  $region12: #{bottleneck_forward.4} parent=0 // pred_region
    _
  $region13: #{bottleneck_forward.4} parent=0 // pred_fallthru
    _
  // Predicated region
  $region14: #{bottleneck_forward.4} parent=0 // pred_check
    _
  $region15: #{bottleneck_forward.4} parent=0 // pred_check_branch
    %231 = sbr.rel (0) target = $region17
  $region16: #{bottleneck_forward.4} parent=0 // pred_region
    _
  $region17: #{bottleneck_forward.4} parent=0 // pred_fallthru
    _
  // Predicated region
  $region18: #{bottleneck_forward.4} parent=0 // pred_check
    _
  $region19: #{bottleneck_forward.4} parent=0 // pred_check_branch
    %233 = sbr.rel (0) target = $region21
  $region20: #{bottleneck_forward.4} parent=0 // pred_region
    _
  $region21: #{bottleneck_forward.4} parent=0 // pred_fallthru
    _
  // Predicated region
  $region22: #{bottleneck_forward.4} parent=0 // pred_check
    _
  $region23: #{bottleneck_forward.4} parent=0 // pred_check_branch
    %235 = sbr.rel (0) target = $region25
  $region24: #{bottleneck_forward.4} parent=0 // pred_region
    _
  $region25: #{bottleneck_forward.4} parent=0 // pred_fallthru
    _

// kernel: bottleneck_forward.6
$region0: #{bottleneck_forward.6}
  #allocation0 [shape = 'u32[]', space=smem, size = 0x4, offset = 0x4, fixed_abs, tag = 'smem constant byte address 0x4 - core index']
  #allocation1 [shape = 'u32[72,128]{1,0:T(1,128)}', space=vmem, size = 0x9000, scoped, tag = 'internal scratch']
  %s0 = inlined_call_operand.vmem [shape: f32[32,4], index: 0, kind: input, shape index: {}]
  %s1 = inlined_call_operand.vmem [shape: f32[1,4], index: 1, kind: input, shape index: {}]
  %s2 = inlined_call_operand.vmem [shape: f32[1,4], index: 2, kind: input, shape index: {}]
  %s3 = inlined_call_operand.vmem [shape: bf16[4,16], index: 3, kind: input, shape index: {}]
  %s4 = inlined_call_operand.vmem [shape: f32[32,16], index: 4, kind: output, shape index: {0}]
  %s5 = inlined_call_operand.vmem [shape: f32[1,2,16], index: 5, kind: output, shape index: {1}]
  %6 = xla_tuple %s4, %s5
  %s7 = sld [smem:[#allocation0]]
  $region34: #{bottleneck_forward.6} parent=0
    _
  %s9 = ssub.s32 1, %s7
  %s10 = scalar_select 0, %s9, %s7
  // Predicated region
  $region2: #{bottleneck_forward.6} parent=0 // pred_check
    _
  $region3: #{bottleneck_forward.6} parent=0 // pred_check_branch
    %12 = sbr.rel (0) target = $region5
  $region4: #{bottleneck_forward.6} parent=0 // pred_region
    _
  $region5: #{bottleneck_forward.6} parent=0 // pred_fallthru
    _
  // Predicated region
  $region6: #{bottleneck_forward.6} parent=0 // pred_check
    _
  $region7: #{bottleneck_forward.6} parent=0 // pred_check_branch
    %14 = sbr.rel (0) target = $region9
  $region8: #{bottleneck_forward.6} parent=0 // pred_region
    _
  $region9: #{bottleneck_forward.6} parent=0 // pred_fallthru
    _
  // Predicated region
  $region10: #{bottleneck_forward.6} parent=0 // pred_check
    _
  $region11: #{bottleneck_forward.6} parent=0 // pred_check_branch
    %16 = sbr.rel (0) target = $region13
  $region12: #{bottleneck_forward.6} parent=0 // pred_region
    _
  $region13: #{bottleneck_forward.6} parent=0 // pred_fallthru
    _
  // Predicated region
  $region14: #{bottleneck_forward.6} parent=0 // pred_check
    _
  $region15: #{bottleneck_forward.6} parent=0 // pred_check_branch
    %18 = sbr.rel (0) target = $region17
  $region16: #{bottleneck_forward.6} parent=0 // pred_region
    _
  $region17: #{bottleneck_forward.6} parent=0 // pred_fallthru
    _
  %v20 = vld [vmem:[%s0] sm:$0xff]
  %v21 = vld [vmem:[%s0 + $0x8] sm:$0xff]
  %v22 = vld [vmem:[%s0 + $0x10] sm:$0xff]
  %v23 = vld [vmem:[%s0 + $0x18] sm:$0xff]
  %v24 = vld [vmem:[%s1] sm:$0x1]
  %v26 = vperm.slane %v24, 0
  %v28 = vmul.f32 %v20, %v26
  %v29 = vmul.f32 %v21, %v26
  %v30 = vmul.f32 %v22, %v26
  %v31 = vmul.f32 %v23, %v26
  %v32 = vld [vmem:[%s2] sm:$0x1]
  %v34 = vperm.slane %v32, 0
  %v36 = vadd.f32 %v28, %v34
  %v37 = vadd.f32 %v29, %v34
  %v38 = vadd.f32 %v30, %v34
  %v39 = vadd.f32 %v31, %v34
  %v40 = vmax.f32 %v36, 0.0
  %v41 = vmax.f32 %v37, 0.0
  %v42 = vmax.f32 %v38, 0.0
  %v43 = vmax.f32 %v39, 0.0
  %v44 = vpack.c.bf16 %v41, %v40
  %v45 = vpack.c.bf16 %v43, %v42
  %v46 = vld [vmem:[%s3] sm:$0x3]
  %vm47 = vcmask 31744
  %v49 = vsel %vm47, %v44, 0
  %v52 = vsel %vm47, %v45, 0
  %vm54 = vcmask 1041408
  %v56 = vsel %vm54, %v46, 0
  %58 = vmatpush.bf16.msra.mxu0 0
  %59 = vmatpush.bf16.msra.mxu0 0
  %60 = vmatpush.bf16.msra.mxu0 0
  %61 = vmatpush.bf16.msra.mxu0 0
  %62 = vmatpush.bf16.msra.mxu0 0
  %63 = vmatpush.bf16.msra.mxu0 0
  %64 = vmatpush.bf16.msra.mxu0 0
  %65 = vmatpush.bf16.msra.mxu0 %v56
  %66 = vmatmul.bf16.gmra.mxu0 %v49
  %v67 = vpop.f32.mrf.mxu0
  %v68 = vadd.f32 0.0, %v67
  %v69 = vpop.f32.mrf.mxu0
  %v70 = vadd.f32 0.0, %v69
  %71 = vmatmul.bf16.gmra.mxu0 %v52
  %v72 = vpop.f32.mrf.mxu0
  %v73 = vadd.f32 0.0, %v72
  %v74 = vpop.f32.mrf.mxu0
  %v75 = vadd.f32 0.0, %v74
  %76 = vdwg.mxu0
  %vm77 = vcmask 130048
  %78 = vst.msk [vmem:[%s4] sm:$0xff] %vm77, %v68
  %79 = vst.msk [vmem:[%s4 + $0x8] sm:$0xff] %vm77, %v70
  %80 = vst.msk [vmem:[%s4 + $0x10] sm:$0xff] %vm77, %v73
  %81 = vst.msk [vmem:[%s4 + $0x18] sm:$0xff] %vm77, %v75
  %v82 = vsel %vm77, %v68, 0.0
  %v83 = vsel %vm77, %v70, 0.0
  %v84 = vadd.f32 %v82, %v83
  %v85 = vsel %vm77, %v73, 0.0
  %v86 = vadd.f32 %v84, %v85
  %v87 = vsel %vm77, %v75, 0.0
  %v88 = vadd.f32 %v86, %v87
  %v89 = vrot.slane %v88, 4
  %v90 = vadd.f32 %v88, %v89
  %v91 = vrot.slane %v90, 2
  %v92 = vadd.f32 %v90, %v91
  %v93 = vrot.slane %v92, 1
  %v94 = vadd.f32 %v92, %v93
  %v95 = vmul.f32 %v68, %v68
  %v96 = vmul.f32 %v70, %v70
  %v97 = vmul.f32 %v73, %v73
  %v98 = vmul.f32 %v75, %v75
  %v99 = vsel %vm77, %v95, 0.0
  %v100 = vsel %vm77, %v96, 0.0
  %v101 = vadd.f32 %v99, %v100
  %v102 = vsel %vm77, %v97, 0.0
  %v103 = vadd.f32 %v101, %v102
  %v104 = vsel %vm77, %v98, 0.0
  %v105 = vadd.f32 %v103, %v104
  %v106 = vrot.slane %v105, 4
  %v107 = vadd.f32 %v105, %v106
  %v108 = vrot.slane %v107, 2
  %v109 = vadd.f32 %v107, %v108
  %v110 = vrot.slane %v109, 1
  %v111 = vadd.f32 %v109, %v110
  %vm112 = vcmask 1040384
  %v113 = vsel %vm112, %v94, %v111
  %vm114 = vcmask 123904
  %115 = vst.msk [vmem:[%s5] sm:$0x3] %vm114, %v113
  // Predicated region
  $region18: #{bottleneck_forward.6} parent=0 // pred_check
    _
  $region19: #{bottleneck_forward.6} parent=0 // pred_check_branch
    %117 = sbr.rel (0) target = $region21
  $region20: #{bottleneck_forward.6} parent=0 // pred_region
    _
  $region21: #{bottleneck_forward.6} parent=0 // pred_fallthru
    _
  // Predicated region
  $region22: #{bottleneck_forward.6} parent=0 // pred_check
    _
  $region23: #{bottleneck_forward.6} parent=0 // pred_check_branch
    %119 = sbr.rel (0) target = $region25
  $region24: #{bottleneck_forward.6} parent=0 // pred_region
    _
  $region25: #{bottleneck_forward.6} parent=0 // pred_fallthru
    _
  // Predicated region
  $region26: #{bottleneck_forward.6} parent=0 // pred_check
    _
  $region27: #{bottleneck_forward.6} parent=0 // pred_check_branch
    %121 = sbr.rel (0) target = $region29
  $region28: #{bottleneck_forward.6} parent=0 // pred_region
    _
  $region29: #{bottleneck_forward.6} parent=0 // pred_fallthru
    _
  // Predicated region
  $region30: #{bottleneck_forward.6} parent=0 // pred_check
    _
  $region31: #{bottleneck_forward.6} parent=0 // pred_check_branch
    %123 = sbr.rel (0) target = $region33
  $region32: #{bottleneck_forward.6} parent=0 // pred_region
    _
  $region33: #{bottleneck_forward.6} parent=0 // pred_fallthru
    _

// kernel: bottleneck_forward.5
$region0: #{bottleneck_forward.5}
  #allocation0 [shape = 'u32[]', space=smem, size = 0x4, offset = 0x4, fixed_abs, tag = 'smem constant byte address 0x4 - core index']
  #allocation1 [shape = 'u32[72,128]{1,0:T(1,128)}', space=vmem, size = 0x9000, scoped, tag = 'internal scratch']
  %s0 = inlined_call_operand.vmem [shape: f32[2,10,2,5,4], index: 0, kind: input, shape index: {}]
  %s1 = inlined_call_operand.vmem [shape: f32[1,4], index: 1, kind: input, shape index: {}]
  %s2 = inlined_call_operand.vmem [shape: f32[1,4], index: 2, kind: input, shape index: {}]
  %s3 = inlined_call_operand.vmem [shape: bf16[9,4,4], index: 3, kind: input, shape index: {}]
  %s4 = inlined_call_operand.vmem [shape: f32[2,4,4,4], index: 4, kind: output, shape index: {0}]
  %s5 = inlined_call_operand.vmem [shape: f32[2,4,2,4], index: 5, kind: output, shape index: {1}]
  %6 = xla_tuple %s4, %s5
  %s7 = sld [smem:[#allocation0]]
  $region65: #{bottleneck_forward.5} parent=0
    _
  %s9 = ssub.s32 1, %s7
  %s10 = scalar_select 0, %s9, %s7
  loop: start=0, step=1, limit=26
  $region2: #{bottleneck_forward.5} parent=0 // loop_pre_header
    _
  $region3: #{bottleneck_forward.5} parent=0 // loop_header
    %s12 = sphi 0, %s16
    %p13 = scmp.ge.s32.totalorder %s12, 26
    %s19 = sphi 0, %s38
    %s20 = sphi 0, %s34
    %s21 = sphi 0, %s30
    %s22 = sphi 0, %s19
    %s23 = sphi 0, %s20
    %s24 = sphi 0, %s21
    %s25 = sphi 0, %s22
    %s26 = sphi 0, %s23
    %s27 = sphi 0, %s24
    %s47 = sphi 0, %s49
    %s50 = sphi 0, %s47
    %s51 = sphi 0, %s50
    %s67 = sphi 0, %s51
    %s71 = sphi 0, %s71
    %s73 = sphi 0, %s71
    %s74 = sphi 0, %s73
    %s88 = sphi 0, %s74
    %s92 = sphi 0, %s92
    %s94 = sphi 0, %s92
    %s95 = sphi 0, %s94
    %s109 = sphi 0, %s95
    %s115 = sphi 0, %s117
    %s118 = sphi 0, %s115
    %s119 = sphi 0, %s118
    %s135 = sphi 0, %s119
    %s143 = sphi 0, %s145
    %s146 = sphi 0, %s143
    %s147 = sphi 0, %s146
    %s163 = sphi 0, %s147
    %s171 = sphi 0, %s173
    %s174 = sphi 0, %s171
    %s175 = sphi 0, %s174
    %s191 = sphi 0, %s175
  $region4: #{bottleneck_forward.5} parent=0 // loop_header_branch
    %15 = sbr.rel (%p13) target = $region8
  $region5: #{bottleneck_forward.5} parent=0 // loop_body
    %s17 = ssub.s32 %s12, 1
    %s18 = ssub.s32 %s12, 2
    %s28 = sadd.s32 1, %s21
    %p29 = scmp.ge.s32.totalorder %s28, 3
    %s30 = scalar_select %p29, 0, %s28
    %s31 = sadd.s32 1, %s20
    %s32 = scalar_select %p29, %s31, %s20
    %p33 = scmp.ge.s32.totalorder %s32, 4
    %s34 = scalar_select %p33, 0, %s32
    %s35 = sadd.s32 1, %s19
    %s36 = scalar_select %p33, %s35, %s19
    %p37 = scmp.ge.s32.totalorder %s36, 2
    %s38 = scalar_select %p37, 0, %s36
    %s39 = smul.u32 %s20, 2
    %s40 = sadd.s32 %s39, %s21
    %s41 = smul.u32 %s34, 2
    %s42 = sadd.s32 %s41, %s30
    %s43 = ssub.s32 %s19, %s38
    %s44 = ssub.s32 %s40, %s42
    %s45 = sor.u32 %s43, %s44
    %p46 = scmp.eq.s32.totalorder %s45, 0
    %s48 = sadd.s32 %s47, 1
    %s49 = scalar_select %p46, %s47, %s48
    %p52 = pneg %p46
    %p53 = scmp.eq.s32.totalorder %s12, 23
    %p54 = por %p52, %p53
    %p55 = scmp.ne.s32.totalorder %s47, %s50
    %p56 = scmp.eq.s32.totalorder %s12, 0
    %p57 = por %p55, %p56
    %p58 = scmp.ne.s32.totalorder %s47, %s50
    %p59 = scmp.eq.s32.totalorder %s17, 23
    %p60 = por %p58, %p59
    %p61 = scmp.ne.s32.totalorder %s50, %s51
    %p62 = scmp.eq.s32.totalorder %s17, 0
    %p63 = por %p61, %p62
    %p64 = scmp.ne.s32.totalorder %s50, %s51
    %p65 = scmp.eq.s32.totalorder %s18, 23
    %p66 = por %p64, %p65
    %p68 = scmp.ne.s32.totalorder %s51, %s67
    %p69 = scmp.eq.s32.totalorder %s18, 0
    %p70 = por %p68, %p69
    %s72 = sadd.s32 %s71, 1
    %p75 = scmp.eq.s32.totalorder %s12, 23
    %p76 = scmp.ne.s32.totalorder %s71, %s73
    %p77 = scmp.eq.s32.totalorder %s12, 0
    %p78 = por %p76, %p77
    %p79 = scmp.ne.s32.totalorder %s71, %s73
    %p80 = scmp.eq.s32.totalorder %s17, 23
    %p81 = por %p79, %p80
    %p82 = scmp.ne.s32.totalorder %s73, %s74
    %p83 = scmp.eq.s32.totalorder %s17, 0
    %p84 = por %p82, %p83
    %p85 = scmp.ne.s32.totalorder %s73, %s74
    %p86 = scmp.eq.s32.totalorder %s18, 23
    %p87 = por %p85, %p86
    %p89 = scmp.ne.s32.totalorder %s74, %s88
    %p90 = scmp.eq.s32.totalorder %s18, 0
    %p91 = por %p89, %p90
    %s93 = sadd.s32 %s92, 1
    %p96 = scmp.eq.s32.totalorder %s12, 23
    %p97 = scmp.ne.s32.totalorder %s92, %s94
    %p98 = scmp.eq.s32.totalorder %s12, 0
    %p99 = por %p97, %p98
    %p100 = scmp.ne.s32.totalorder %s92, %s94
    %p101 = scmp.eq.s32.totalorder %s17, 23
    %p102 = por %p100, %p101
    %p103 = scmp.ne.s32.totalorder %s94, %s95
    %p104 = scmp.eq.s32.totalorder %s17, 0
    %p105 = por %p103, %p104
    %p106 = scmp.ne.s32.totalorder %s94, %s95
    %p107 = scmp.eq.s32.totalorder %s18, 23
    %p108 = por %p106, %p107
    %p110 = scmp.ne.s32.totalorder %s95, %s109
    %p111 = scmp.eq.s32.totalorder %s18, 0
    %p112 = por %p110, %p111
    %s113 = ssub.s32 %s21, %s30
    %p114 = scmp.eq.s32.totalorder %s113, 0
    %s116 = sadd.s32 %s115, 1
    %s117 = scalar_select %p114, %s115, %s116
    %p120 = pneg %p114
    %p121 = scmp.eq.s32.totalorder %s12, 23
    %p122 = por %p120, %p121
    %p123 = scmp.ne.s32.totalorder %s115, %s118
    %p124 = scmp.eq.s32.totalorder %s12, 0
    %p125 = por %p123, %p124
    %p126 = scmp.ne.s32.totalorder %s115, %s118
    %p127 = scmp.eq.s32.totalorder %s17, 23
    %p128 = por %p126, %p127
    %p129 = scmp.ne.s32.totalorder %s118, %s119
    %p130 = scmp.eq.s32.totalorder %s17, 0
    %p131 = por %p129, %p130
    %p132 = scmp.ne.s32.totalorder %s118, %s119
    %p133 = scmp.eq.s32.totalorder %s18, 23
    %p134 = por %p132, %p133
    %p136 = scmp.ne.s32.totalorder %s119, %s135
    %p137 = scmp.eq.s32.totalorder %s18, 0
    %p138 = por %p136, %p137
    %s139 = ssub.s32 %s19, %s38
    %s140 = ssub.s32 %s20, %s34
    %s141 = sor.u32 %s139, %s140
    %p142 = scmp.eq.s32.totalorder %s141, 0
    %s144 = sadd.s32 %s143, 1
    %s145 = scalar_select %p142, %s143, %s144
    %p148 = pneg %p142
    %p149 = scmp.eq.s32.totalorder %s12, 23
    %p150 = por %p148, %p149
    %p151 = scmp.ne.s32.totalorder %s143, %s146
    %p152 = scmp.eq.s32.totalorder %s12, 0
    %p153 = por %p151, %p152
    %p154 = scmp.ne.s32.totalorder %s143, %s146
    %p155 = scmp.eq.s32.totalorder %s17, 23
    %p156 = por %p154, %p155
    %p157 = scmp.ne.s32.totalorder %s146, %s147
    %p158 = scmp.eq.s32.totalorder %s17, 0
    %p159 = por %p157, %p158
    %p160 = scmp.ne.s32.totalorder %s146, %s147
    %p161 = scmp.eq.s32.totalorder %s18, 23
    %p162 = por %p160, %p161
    %p164 = scmp.ne.s32.totalorder %s147, %s163
    %p165 = scmp.eq.s32.totalorder %s18, 0
    %p166 = por %p164, %p165
    %s167 = ssub.s32 %s19, %s38
    %s168 = ssub.s32 %s20, %s34
    %s169 = sor.u32 %s167, %s168
    %p170 = scmp.eq.s32.totalorder %s169, 0
    %s172 = sadd.s32 %s171, 1
    %s173 = scalar_select %p170, %s171, %s172
    %p176 = pneg %p170
    %p177 = scmp.eq.s32.totalorder %s12, 23
    %p178 = por %p176, %p177
    %p179 = scmp.ne.s32.totalorder %s171, %s174
    %p180 = scmp.eq.s32.totalorder %s12, 0
    %p181 = por %p179, %p180
    %p182 = scmp.ne.s32.totalorder %s171, %s174
    %p183 = scmp.eq.s32.totalorder %s17, 23
    %p184 = por %p182, %p183
    %p185 = scmp.ne.s32.totalorder %s174, %s175
    %p186 = scmp.eq.s32.totalorder %s17, 0
    %p187 = por %p185, %p186
    %p188 = scmp.ne.s32.totalorder %s174, %s175
    %p189 = scmp.eq.s32.totalorder %s18, 23
    %p190 = por %p188, %p189
    %p192 = scmp.ne.s32.totalorder %s175, %s191
    %p193 = scmp.eq.s32.totalorder %s18, 0
    %p194 = por %p192, %p193
    %p195 = scmp.le.s32.totalorder 1, %s12
    %p196 = scmp.lt.s32.totalorder %s12, 25
    %p197 = pnand %p195, %p196
    %p198 = pneg %p197
    // Predicated region
    $region9: #{bottleneck_forward.5} parent=5 // pred_check
      _
    $region10: #{bottleneck_forward.5} parent=5 // pred_check_branch
      %200 = sbr.rel (%p197) target = $region12
    $region11: #{bottleneck_forward.5} parent=5 // pred_region
      %s201 = ssub.s32 %s12, 1
      // Predicated region
      $region13: #{bottleneck_forward.5} parent=11 // pred_check
        %p202 = pneg %p84
      $region14: #{bottleneck_forward.5} parent=11 // pred_check_branch
        %204 = sbr.rel (%p202) target = $region16
      $region15: #{bottleneck_forward.5} parent=11 // pred_region
        _
      $region16: #{bottleneck_forward.5} parent=11 // pred_fallthru
        _
      // Predicated region
      $region17: #{bottleneck_forward.5} parent=11 // pred_check
        %p205 = pneg %p105
      $region18: #{bottleneck_forward.5} parent=11 // pred_check_branch
        %207 = sbr.rel (%p205) target = $region20
      $region19: #{bottleneck_forward.5} parent=11 // pred_region
        _
      $region20: #{bottleneck_forward.5} parent=11 // pred_fallthru
        _
    $region12: #{bottleneck_forward.5} parent=5 // pred_fallthru
      _
    %p208 = scmp.lt.s32.totalorder %s12, 24
    // Predicated region
    $region21: #{bottleneck_forward.5} parent=5 // pred_check
      %p209 = pneg %p208
    $region22: #{bottleneck_forward.5} parent=5 // pred_check_branch
      %211 = sbr.rel (%p209) target = $region24
    $region23: #{bottleneck_forward.5} parent=5 // pred_region
      // Predicated region
      $region25: #{bottleneck_forward.5} parent=23 // pred_check
        %p212 = pneg %p57
      $region26: #{bottleneck_forward.5} parent=23 // pred_check_branch
        %214 = sbr.rel (%p212) target = $region28
      $region27: #{bottleneck_forward.5} parent=23 // pred_region
        %s215 = smul.u32 %s20, 2
        %s216 = sadd.s32 %s215, %s21
        %p217 = scmp.lt.s32.totalorder %s19, 1
        %s218 = scalar_select %p217, %s19, 1
        %p219 = scmp.lt.s32.totalorder %s216, 9
        %s220 = scalar_select %p219, %s216, 9
        %s221 = smul.addr %s220, 2
        %s222 = smul.addr %s218, 20
        %s223 = sadd.s32 %s221, %s222
        %s224 = smul.addr %s223, 8
        %s225 = scalar_lea.vmem %s0, %s224
        %s226 = smul.u32 %s20, 2
        %s227 = sadd.s32 %s226, %s21
      $region28: #{bottleneck_forward.5} parent=23 // pred_fallthru
        _
      // Predicated region
      $region29: #{bottleneck_forward.5} parent=23 // pred_check
        %p228 = pneg %p125
      $region30: #{bottleneck_forward.5} parent=23 // pred_check_branch
        %230 = sbr.rel (%p228) target = $region32
      $region31: #{bottleneck_forward.5} parent=23 // pred_region
        %s231 = smul.u32 3, %s21
        %p232 = scmp.lt.s32.totalorder %s231, 8
        %s233 = scalar_select %p232, %s231, 8
        %s234 = smul.addr %s233, 2
        %s235 = scalar_lea.vmem %s3, %s234
        %s236 = smul.u32 3, %s21
      $region32: #{bottleneck_forward.5} parent=23 // pred_fallthru
        _
    $region24: #{bottleneck_forward.5} parent=5 // pred_fallthru
      _
    %p237 = scmp.le.s32.totalorder 1, %s12
    %p238 = scmp.lt.s32.totalorder %s12, 25
    %p239 = pnand %p237, %p238
    %p240 = pneg %p239
    // Predicated region
    $region33: #{bottleneck_forward.5} parent=5 // pred_check
      _
    $region34: #{bottleneck_forward.5} parent=5 // pred_check_branch
      %242 = sbr.rel (%p239) target = $region36
    $region35: #{bottleneck_forward.5} parent=5 // pred_region
      %s243 = ssub.s32 %s12, 1
      %s244 = smul.u32 %s23, 2
      %s245 = sadd.s32 %s244, %s24
      %p246 = scmp.lt.s32.totalorder %s22, 1
      %s247 = scalar_select %p246, %s22, 1
      %p248 = scmp.lt.s32.totalorder %s245, 9
      %s249 = scalar_select %p248, %s245, 9
      %s250 = smul.addr %s249, 2
      %s251 = smul.addr %s247, 20
      %s252 = sadd.s32 %s250, %s251
      %s253 = smul.addr %s252, 8
      %s254 = scalar_lea.vmem %s0, %s253
      %p255 = pneg %p63
      %p256 = pneg %p60
      %p257 = pneg %p84
      %p258 = pneg %p81
      %p259 = pneg %p105
      %p260 = pneg %p102
      %s261 = smul.u32 3, %s24
      %p262 = scmp.lt.s32.totalorder %s261, 8
      %s263 = scalar_select %p262, %s261, 8
      %s264 = smul.addr %s263, 2
      %s265 = scalar_lea.vmem %s3, %s264
      %p266 = pneg %p131
      %p267 = pneg %p128
      %p268 = pneg %p159
      %p269 = pneg %p156
      %p270 = scmp.lt.s32.totalorder %s22, 1
      %s271 = scalar_select %p270, %s22, 1
      %p272 = scmp.lt.s32.totalorder %s23, 3
      %s273 = scalar_select %p272, %s23, 3
      %s274 = smul.addr %s271, 4
      %s275 = sadd.s32 %s273, %s274
      %s276 = smul.addr %s275, 4
      %s277 = scalar_lea.vmem %s4, %s276
      %p278 = pneg %p187
      %p279 = pneg %p184
      %p280 = scmp.lt.s32.totalorder %s22, 1
      %s281 = scalar_select %p280, %s22, 1
      %p282 = scmp.lt.s32.totalorder %s23, 3
      %s283 = scalar_select %p282, %s23, 3
      %s284 = smul.addr %s281, 4
      %s285 = sadd.s32 %s283, %s284
      %s286 = smul.addr %s285, 2
      %s287 = scalar_lea.vmem %s5, %s286
      %s288 = smul.u32 %s23, 2
      %s289 = sadd.s32 %s288, %s24
      %p290 = scmp.lt.s32.totalorder %s22, 1
      %s291 = scalar_select %p290, %s22, 1
      %p292 = scmp.lt.s32.totalorder %s289, 9
      %s293 = scalar_select %p292, %s289, 9
      %s294 = smul.addr %s293, 2
      %s295 = smul.addr %s291, 20
      %s296 = sadd.s32 %s294, %s295
      %s297 = smul.addr %s296, 8
      %s298 = scalar_lea.vmem %s0, %s297
      %s299 = smul.u32 %s23, 2
      %s300 = sadd.s32 %s299, %s24
      %s301 = smul.u32 3, %s24
      %p302 = scmp.lt.s32.totalorder %s301, 8
      %s303 = scalar_select %p302, %s301, 8
      %s304 = smul.addr %s303, 2
      %s305 = scalar_lea.vmem %s3, %s304
      %s306 = smul.u32 3, %s24
      %p307 = scmp.lt.s32.totalorder %s22, 1
      %s308 = scalar_select %p307, %s22, 1
      %p309 = scmp.lt.s32.totalorder %s23, 3
      %s310 = scalar_select %p309, %s23, 3
      %s311 = smul.addr %s308, 4
      %s312 = sadd.s32 %s310, %s311
      %s313 = smul.addr %s312, 4
      %s314 = scalar_lea.vmem %s4, %s313
      %p315 = scmp.lt.s32.totalorder %s22, 1
      %s316 = scalar_select %p315, %s22, 1
      %p317 = scmp.lt.s32.totalorder %s23, 3
      %s318 = scalar_select %p317, %s23, 3
      %s319 = smul.addr %s316, 4
      %s320 = sadd.s32 %s318, %s319
      %s321 = smul.addr %s320, 2
      %s322 = scalar_lea.vmem %s5, %s321
      %s324 = smul.u32 %s23, 2
      %s325 = sadd.s32 %s324, %s24
      %p326 = scmp.eq.s32.totalorder %s24, 0
      // Predicated region
      $region37: #{bottleneck_forward.5} parent=35 // pred_check
        %p327 = pneg %p326
      $region38: #{bottleneck_forward.5} parent=35 // pred_check_branch
        %329 = sbr.rel (%p327) target = $region40
      $region39: #{bottleneck_forward.5} parent=35 // pred_region
        %vm330 = vcmask 27648
        %331 = vst.msk [vmem:[%s314] sm:$0xf] %vm330, 0.0
      $region40: #{bottleneck_forward.5} parent=35 // pred_fallthru
        _
      %v332 = vld [vmem:[%s298] sm:$0x1f]
      %v333 = vld [vmem:[%s298 + $0x8] sm:$0x1f]
      %v334 = vld [vmem:[%s1] sm:$0x1]
      %v336 = vperm.slane %v334, 0
      %v338 = vmul.f32 %v332, %v336
      %v339 = vmul.f32 %v333, %v336
      %v340 = vld [vmem:[%s2] sm:$0x1]
      %v342 = vperm.slane %v340, 0
      %v344 = vadd.f32 %v338, %v342
      %v345 = vadd.f32 %v339, %v342
      %v346 = vmax.f32 %v344, 0.0
      %v347 = vmax.f32 %v345, 0.0
      %v348 = vlaneseq
      %v349 = vshrl.u32 %v348, 7
      %v350 = vmul.u32 %v349, 2
      %v351 = vadd.s32 %v350, 1
      %vm352 = vcmp.ge.s32.totalorder %v350, 1
      %vm353 = vcmp.ge.s32.totalorder %v351, 1
      %vm354 = vcmp.le.s32.totalorder %v350, 8
      %vm355 = vcmp.le.s32.totalorder %v351, 8
      %vm356 = vmand %vm352, %vm354
      %vm357 = vmand %vm353, %vm355
      %p358 = scmp.ge.s32.totalorder %s325, 1
      %s359 = scalar_select %p358, 1, 0
      %v360 = vstv %s359
      %vm361 = vcmp.eq.s32.totalorder %v360, 1
      %vm362 = vmand %vm356, %vm361
      %vm363 = vmand %vm357, %vm361
      %p364 = scmp.le.s32.totalorder %s325, 8
      %s365 = scalar_select %p364, 1, 0
      %v366 = vstv %s365
      %vm367 = vcmp.eq.s32.totalorder %v366, 1
      %vm368 = vmand %vm362, %vm367
      %vm369 = vmand %vm363, %vm367
      %v370 = vsel %vm368, %v346, 0.0
      %v371 = vsel %vm369, %v347, 0.0
      %v372 = vpack.c.bf16 %v370, %v370
      %v373 = vpack.c.bf16 %v371, %v371
      %v374 = vld [vmem:[%s305] sm:$0x3]
      %s375 = scalar_lea.vmem %s305, 2
      %v376 = vld [vmem:[%s375] sm:$0x3]
      %vm377 = vcmask 31744
      %v379 = vsel %vm377, %v373, 0
      %vm381 = vcmask 1041408
      %v383 = vsel %vm381, %v376, 0
      %385 = vmatpush.bf16.msra.mxu0 0
      %386 = vmatpush.bf16.msra.mxu0 0
      %387 = vmatpush.bf16.msra.mxu0 0
      %388 = vmatpush.bf16.msra.mxu0 0
      %389 = vmatpush.bf16.msra.mxu0 0
      %390 = vmatpush.bf16.msra.mxu0 0
      %391 = vmatpush.bf16.msra.mxu0 0
      %392 = vmatpush.bf16.msra.mxu0 %v383
      %393 = vmatmul.bf16.gmra.mxu0 %v379
      %v394 = vpop.f32.mrf.mxu0
      %v395 = vadd.f32 0.0, %v394
      %v396 = vpop.f32.mrf.mxu0
      %397 = vdwg.mxu0
      %v399 = vsel %vm377, %v372, 0
      %v402 = vsel %vm381, %v374, 0
      %404 = vmatpush.bf16.msra.mxu0 0
      %405 = vmatpush.bf16.msra.mxu0 0
      %406 = vmatpush.bf16.msra.mxu0 0
      %407 = vmatpush.bf16.msra.mxu0 0
      %408 = vmatpush.bf16.msra.mxu0 0
      %409 = vmatpush.bf16.msra.mxu0 0
      %410 = vmatpush.bf16.msra.mxu0 0
      %411 = vmatpush.bf16.msra.mxu0 %v402
      %412 = vmatmul.bf16.gmra.mxu0 %v399
      %v413 = vpop.f32.mrf.mxu0
      %v414 = vadd.f32 %v395, %v413
      %v415 = vpop.f32.mrf.mxu0
      %416 = vdwg.mxu0
      %s417 = scalar_lea.vmem %s305, 4
      %v418 = vld [vmem:[%s417] sm:$0x3]
      %v420 = vunpack.c.l.b16 %v372
      %v421 = vpack.c.b16 %v420, %v420
      %v423 = vshrl.u32 %v421, 16
      %v425 = vshll.u32 %v421, 16
      %v427 = vrot.slane %v425, 1
      %v428 = vor.u32 %v423, %v427
      %v430 = vsel %vm377, %v428, 0
      %v433 = vsel %vm381, %v418, 0
      %435 = vmatpush.bf16.msra.mxu0 0
      %436 = vmatpush.bf16.msra.mxu0 0
      %437 = vmatpush.bf16.msra.mxu0 0
      %438 = vmatpush.bf16.msra.mxu0 0
      %439 = vmatpush.bf16.msra.mxu0 0
      %440 = vmatpush.bf16.msra.mxu0 0
      %441 = vmatpush.bf16.msra.mxu0 0
      %442 = vmatpush.bf16.msra.mxu0 %v433
      %443 = vmatmul.bf16.gmra.mxu0 %v430
      %v444 = vpop.f32.mrf.mxu0
      %v445 = vadd.f32 0.0, %v444
      %v446 = vpop.f32.mrf.mxu0
      %447 = vdwg.mxu0
      %v448 = vadd.f32 %v414, %v445
      %v449 = vld [vmem:[%s314] sm:$0xf]
      %v450 = vadd.f32 %v449, %v448
      %vm451 = vcmask 27648
      %452 = vst.msk [vmem:[%s314] sm:$0xf] %vm451, %v450
      %p453 = scmp.eq.s32.totalorder %s24, 2
      // Predicated region
      $region41: #{bottleneck_forward.5} parent=35 // pred_check
        %p454 = pneg %p453
      $region42: #{bottleneck_forward.5} parent=35 // pred_check_branch
        %456 = sbr.rel (%p454) target = $region44
      $region43: #{bottleneck_forward.5} parent=35 // pred_region
        %v457 = vld [vmem:[%s314] sm:$0xf]
        %v458 = vsel %vm451, %v457, 0.0
        %v459 = vrot.slane %v458, 4
        %v460 = vadd.f32 %v458, %v459
        %v461 = vrot.slane %v460, 2
        %v462 = vadd.f32 %v460, %v461
        %v463 = vrot.slane %v462, 1
        %v464 = vadd.f32 %v462, %v463
        %v465 = vmul.f32 %v457, %v457
        %v466 = vsel %vm451, %v465, 0.0
        %v467 = vrot.slane %v466, 4
        %v468 = vadd.f32 %v466, %v467
        %v469 = vrot.slane %v468, 2
        %v470 = vadd.f32 %v468, %v469
        %v471 = vrot.slane %v470, 1
        %v472 = vadd.f32 %v470, %v471
        %vm473 = vcmask 1040384
        %v474 = vsel %vm473, %v464, %v472
        %vm475 = vcmask 25600
        %476 = vst.msk [vmem:[%s322] sm:$0x3] %vm475, %v474
      $region44: #{bottleneck_forward.5} parent=35 // pred_fallthru
        _
      %p477 = scmp.lt.s32.totalorder %s22, 1
      %s478 = scalar_select %p477, %s22, 1
      %p479 = scmp.lt.s32.totalorder %s23, 3
      %s480 = scalar_select %p479, %s23, 3
      %s481 = smul.addr %s478, 4
      %s482 = sadd.s32 %s480, %s481
      %s483 = smul.addr %s482, 4
      %s484 = scalar_lea.vmem %s4, %s483
      %p485 = scmp.lt.s32.totalorder %s22, 1
      %s486 = scalar_select %p485, %s22, 1
      %p487 = scmp.lt.s32.totalorder %s23, 3
      %s488 = scalar_select %p487, %s23, 3
      %s489 = smul.addr %s486, 4
      %s490 = sadd.s32 %s488, %s489
      %s491 = smul.addr %s490, 2
      %s492 = scalar_lea.vmem %s5, %s491
      // Predicated region
      $region45: #{bottleneck_forward.5} parent=35 // pred_check
        %p493 = pneg %p156
      $region46: #{bottleneck_forward.5} parent=35 // pred_check_branch
        %495 = sbr.rel (%p493) target = $region48
      $region47: #{bottleneck_forward.5} parent=35 // pred_region
        _
      $region48: #{bottleneck_forward.5} parent=35 // pred_fallthru
        _
      // Predicated region
      $region49: #{bottleneck_forward.5} parent=35 // pred_check
        %p496 = pneg %p184
      $region50: #{bottleneck_forward.5} parent=35 // pred_check_branch
        %498 = sbr.rel (%p496) target = $region52
      $region51: #{bottleneck_forward.5} parent=35 // pred_region
        _
      $region52: #{bottleneck_forward.5} parent=35 // pred_fallthru
        _
    $region36: #{bottleneck_forward.5} parent=5 // pred_fallthru
      _
    %p499 = scmp.le.s32.totalorder 2, %s12
    // Predicated region
    $region53: #{bottleneck_forward.5} parent=5 // pred_check
      %p500 = pneg %p499
    $region54: #{bottleneck_forward.5} parent=5 // pred_check_branch
      %502 = sbr.rel (%p500) target = $region56
    $region55: #{bottleneck_forward.5} parent=5 // pred_region
      %s503 = ssub.s32 %s12, 2
      // Predicated region
      $region57: #{bottleneck_forward.5} parent=55 // pred_check
        %p504 = pneg %p162
      $region58: #{bottleneck_forward.5} parent=55 // pred_check_branch
        %506 = sbr.rel (%p504) target = $region60
      $region59: #{bottleneck_forward.5} parent=55 // pred_region
        %p507 = scmp.lt.s32.totalorder %s25, 1
        %s508 = scalar_select %p507, %s25, 1
        %p509 = scmp.lt.s32.totalorder %s26, 3
        %s510 = scalar_select %p509, %s26, 3
        %s511 = smul.addr %s508, 4
        %s512 = sadd.s32 %s510, %s511
        %s513 = smul.addr %s512, 4
        %s514 = scalar_lea.vmem %s4, %s513
      $region60: #{bottleneck_forward.5} parent=55 // pred_fallthru
        _
      // Predicated region
      $region61: #{bottleneck_forward.5} parent=55 // pred_check
        %p515 = pneg %p190
      $region62: #{bottleneck_forward.5} parent=55 // pred_check_branch
        %517 = sbr.rel (%p515) target = $region64
      $region63: #{bottleneck_forward.5} parent=55 // pred_region
        %p518 = scmp.lt.s32.totalorder %s25, 1
        %s519 = scalar_select %p518, %s25, 1
        %p520 = scmp.lt.s32.totalorder %s26, 3
        %s521 = scalar_select %p520, %s26, 3
        %s522 = smul.addr %s519, 4
        %s523 = sadd.s32 %s521, %s522
        %s524 = smul.addr %s523, 2
        %s525 = scalar_lea.vmem %s5, %s524
      $region64: #{bottleneck_forward.5} parent=55 // pred_fallthru
        _
    $region56: #{bottleneck_forward.5} parent=5 // pred_fallthru
      _
  $region6: #{bottleneck_forward.5} parent=0 // loop_footer
    %s16 = sadd.s32 1, %s12
  $region7: #{bottleneck_forward.5} parent=0 // loop_footer_branch
    %11 = sbr.rel target = $region3
  $region8: #{bottleneck_forward.5} parent=0 // loop_exit
    _

// kernel: bottleneck_forward.7
$region0: #{bottleneck_forward.7}
  #allocation0 [shape = 'u32[]', space=smem, size = 0x4, offset = 0x4, fixed_abs, tag = 'smem constant byte address 0x4 - core index']
  #allocation1 [shape = 'u32[72,128]{1,0:T(1,128)}', space=vmem, size = 0x9000, scoped, tag = 'internal scratch']
  %s0 = inlined_call_operand.vmem [shape: f32[32,16], index: 0, kind: input, shape index: {}]
  %s1 = inlined_call_operand.vmem [shape: f32[32,8], index: 1, kind: input, shape index: {}]
  %s2 = inlined_call_operand.vmem [shape: f32[1,16], index: 2, kind: input, shape index: {}]
  %s3 = inlined_call_operand.vmem [shape: f32[1,16], index: 3, kind: input, shape index: {}]
  %s4 = inlined_call_operand.vmem [shape: bf16[8,16], index: 4, kind: input, shape index: {}]
  %s5 = inlined_call_operand.hbm [shape: f32[32,16], index: 5, kind: output, shape index: {}]
  %s6 = sld [smem:[#allocation0]]
  $region30: #{bottleneck_forward.7} parent=0
    _
  %s8 = ssub.s32 1, %s6
  %s9 = scalar_select 0, %s8, %s6
  $region1: #{bottleneck_forward.7} parent=0
    #allocation2 [shape = 'u8[16384]{0}', space=vmem, size = 0x4000, scoped, tag = 'output window, operand 0, single buffered']
    #allocation3 [shape = 's32[1]{0}', space=sflag, size = 0x4, scoped, tag = 'scoped memory for bottleneck_forward.7']
    %10 = vsyncpa [#allocation3], 0
    // Predicated region
    $region2: #{bottleneck_forward.7} parent=1 // pred_check
      _
    $region3: #{bottleneck_forward.7} parent=1 // pred_check_branch
      %12 = sbr.rel (0) target = $region5
    $region4: #{bottleneck_forward.7} parent=1 // pred_region
      _
    $region5: #{bottleneck_forward.7} parent=1 // pred_fallthru
      _
    // Predicated region
    $region6: #{bottleneck_forward.7} parent=1 // pred_check
      _
    $region7: #{bottleneck_forward.7} parent=1 // pred_check_branch
      %14 = sbr.rel (0) target = $region9
    $region8: #{bottleneck_forward.7} parent=1 // pred_region
      _
    $region9: #{bottleneck_forward.7} parent=1 // pred_fallthru
      _
    // Predicated region
    $region10: #{bottleneck_forward.7} parent=1 // pred_check
      _
    $region11: #{bottleneck_forward.7} parent=1 // pred_check_branch
      %16 = sbr.rel (0) target = $region13
    $region12: #{bottleneck_forward.7} parent=1 // pred_region
      _
    $region13: #{bottleneck_forward.7} parent=1 // pred_fallthru
      _
    // Predicated region
    $region14: #{bottleneck_forward.7} parent=1 // pred_check
      _
    $region15: #{bottleneck_forward.7} parent=1 // pred_check_branch
      %18 = sbr.rel (0) target = $region17
    $region16: #{bottleneck_forward.7} parent=1 // pred_region
      _
    $region17: #{bottleneck_forward.7} parent=1 // pred_fallthru
      _
    // Predicated region
    $region18: #{bottleneck_forward.7} parent=1 // pred_check
      _
    $region19: #{bottleneck_forward.7} parent=1 // pred_check_branch
      %20 = sbr.rel (0) target = $region21
    $region20: #{bottleneck_forward.7} parent=1 // pred_region
      _
    $region21: #{bottleneck_forward.7} parent=1 // pred_fallthru
      _
    %v22 = vld [vmem:[%s1] sm:$0xff]
    %v23 = vld [vmem:[%s1 + $0x8] sm:$0xff]
    %v24 = vld [vmem:[%s1 + $0x10] sm:$0xff]
    %v25 = vld [vmem:[%s1 + $0x18] sm:$0xff]
    %v26 = vpack.c.bf16 %v23, %v22
    %v27 = vpack.c.bf16 %v25, %v24
    %v28 = vld [vmem:[%s4] sm:$0xf]
    %vm29 = vcmask 64512
    %v31 = vsel %vm29, %v26, 0
    %v34 = vsel %vm29, %v27, 0
    %vm36 = vcmask 1043456
    %v38 = vsel %vm36, %v28, 0
    %40 = vmatpush.bf16.msra.mxu0 0
    %41 = vmatpush.bf16.msra.mxu0 0
    %42 = vmatpush.bf16.msra.mxu0 0
    %43 = vmatpush.bf16.msra.mxu0 0
    %44 = vmatpush.bf16.msra.mxu0 0
    %45 = vmatpush.bf16.msra.mxu0 0
    %46 = vmatpush.bf16.msra.mxu0 0
    %47 = vmatpush.bf16.msra.mxu0 %v38
    %48 = vmatmul.bf16.gmra.mxu0 %v31
    %v49 = vpop.f32.mrf.mxu0
    %v50 = vadd.f32 0.0, %v49
    %v51 = vpop.f32.mrf.mxu0
    %v52 = vadd.f32 0.0, %v51
    %53 = vmatmul.bf16.gmra.mxu0 %v34
    %v54 = vpop.f32.mrf.mxu0
    %v55 = vadd.f32 0.0, %v54
    %v56 = vpop.f32.mrf.mxu0
    %v57 = vadd.f32 0.0, %v56
    %58 = vdwg.mxu0
    %v59 = vld [vmem:[%s0] sm:$0xff]
    %v60 = vld [vmem:[%s0 + $0x8] sm:$0xff]
    %v61 = vld [vmem:[%s0 + $0x10] sm:$0xff]
    %v62 = vld [vmem:[%s0 + $0x18] sm:$0xff]
    %v63 = vld [vmem:[%s2] sm:$0x1]
    %v65 = vperm.slane %v63, 0
    %v67 = vmul.f32 %v59, %v65
    %v68 = vmul.f32 %v60, %v65
    %v69 = vmul.f32 %v61, %v65
    %v70 = vmul.f32 %v62, %v65
    %v71 = vld [vmem:[%s3] sm:$0x1]
    %v73 = vperm.slane %v71, 0
    %v75 = vadd.f32 %v67, %v73
    %v76 = vadd.f32 %v68, %v73
    %v77 = vadd.f32 %v69, %v73
    %v78 = vadd.f32 %v70, %v73
    %v79 = vadd.f32 %v75, %v50
    %v80 = vadd.f32 %v76, %v52
    %v81 = vadd.f32 %v77, %v55
    %v82 = vadd.f32 %v78, %v57
    %v83 = vmax.f32 %v79, 0.0
    %v84 = vmax.f32 %v80, 0.0
    %v85 = vmax.f32 %v81, 0.0
    %v86 = vmax.f32 %v82, 0.0
    %vm87 = vcmask 130048
    %88 = vst.msk [vmem:[#allocation2] sm:$0xff] %vm87, %v83
    %89 = vst.msk [vmem:[#allocation2 + $0x8] sm:$0xff] %vm87, %v84
    %90 = vst.msk [vmem:[#allocation2 + $0x10] sm:$0xff] %vm87, %v85
    %91 = vst.msk [vmem:[#allocation2 + $0x18] sm:$0xff] %vm87, %v86
    // Predicated region
    $region22: #{bottleneck_forward.7} parent=1 // pred_check
      _
    $region23: #{bottleneck_forward.7} parent=1 // pred_check_branch
      %93 = sbr.rel (0) target = $region25
    $region24: #{bottleneck_forward.7} parent=1 // pred_region
      %95 = vsyncadd [#allocation3], 0
      %s96 = sshll.u32 [#allocation2], 4
      %s97 = int_to_ptr.vmem [resolvable:$true] %s96
      %s98 = sshll.u32 %s5, 4
      %s99 = int_to_ptr.hbm [resolvable:$true] %s98
      %104 = dma.vmem_to_hbm [thread:$0]  %s97, 512, %s99, [#allocation3], 128, 128, 8
    $region25: #{bottleneck_forward.7} parent=1 // pred_fallthru
      _
    // Predicated region
    $region26: #{bottleneck_forward.7} parent=1 // pred_check
      _
    $region27: #{bottleneck_forward.7} parent=1 // pred_check_branch
      %106 = sbr.rel (0) target = $region29
    $region28: #{bottleneck_forward.7} parent=1 // pred_region
      %108 = dma.done [#allocation3], 512
    $region29: #{bottleneck_forward.7} parent=1 // pred_fallthru
      _
    %109 = vsyncpa [#allocation3], 1

</llo_original>
